<compile_context>
chip_gen: v5e
topology: v5e:2x2
jax: 0.10.0
libtpu: 0.0.40
codegen_flags: <defaults>
</compile_context>

<pallas_src>
import functools

import numpy as np
import jax
import jax.numpy as jnp
from jax import lax
from jax.experimental import pallas as pl
from jax.experimental.pallas import tpu as pltpu


# -----------------------------------------------------------------------------
# Pallas kernel: the whole CausalCNN pipeline for one block of batch rows.
# -----------------------------------------------------------------------------
def causal_cnn_kernel(x_ref, w_ref, bias_ref, o_ref, pool_scratch, *, K):
    """x_ref: (Bblk, L, Cp) f32; w_ref: (4, K*Cp, Cp) (bf16 or f32, BN scale
    folded in); bias_ref: (4, 1, Cp) f32; o_ref: (Bblk, L//6, Cp) f32;
    pool_scratch: (Bblk*L, Cp) f32 VMEM scratch reused by both pools."""
    Bblk, L, Cp = x_ref.shape
    L1 = L // 3
    L2 = L1 // 2
    mm_dtype = w_ref.dtype

    # Fold the Bblk batch segments along rows (layout-preserving collapse).
    h = x_ref[...].reshape(Bblk * L, Cp)

    def conv_bias_relu(h, layer, seg):
        rows = h.shape[0]
        nseg = rows // seg
        ridx = lax.broadcasted_iota(jnp.int32, (rows, 1), 0)
        # Position within the batch segment; rows whose causal read would
        # cross a segment boundary (or wrap around the array, for segment 0)
        # are zeroed per tap.
        seg_pos = ridx if nseg == 1 else ridx % seg
        taps = []
        for k in range(K):
            j = (K - 1) - k                      # causal shift of tap k
            if j == 0:
                tap = h
            else:
                # tap[t] = h[t - j]; wrapped rows masked to zero below.
                tap = pltpu.roll(h, shift=j, axis=0)
                tap = jnp.where(seg_pos < j, 0.0, tap)
            taps.append(tap.astype(mm_dtype))
        # im2col: one lane-aligned concat + ONE MXU matmul covering all K taps.
        hcat = jnp.concatenate(taps, axis=1)     # (rows, K*Cp)
        acc = jnp.dot(hcat, w_ref[layer], preferred_element_type=jnp.float32)
        # BN scale already folded into w; apply folded bias + ReLU in f32.
        return jnp.maximum(acc + bias_ref[layer], 0.0)

    def maxpool(h, k):
        # MaxPool1d(kernel_size=k, stride=k): write activations to scratch
        # once, then k strided reads + elementwise max (no O(rows^2) select).
        # Correctness note: relies on each batch segment's length being a
        # multiple of k (guaranteed by L % 6 == 0) so no selected window
        # straddles a segment boundary.
        rows = h.shape[0]
        out_rows = rows // k
        pool_scratch[pl.ds(0, rows), :] = h
        out = pool_scratch[pl.ds(0, out_rows, stride=k), :]
        for d in range(1, k):
            out = jnp.maximum(out, pool_scratch[pl.ds(d, out_rows, stride=k), :])
        return out

    h = conv_bias_relu(h, 0, L)        # conv1 + bn1 + relu1
    h = conv_bias_relu(h, 1, L)        # conv2 + bn2 + relu2
    h = maxpool(h, 3)                  # pool1 (dropout1: identity in eval)
    h = conv_bias_relu(h, 2, L1)       # conv3 + bn3 + relu3
    h = conv_bias_relu(h, 3, L1)       # conv4 + bn4 + relu4
    h = maxpool(h, 2)                  # pool2 (dropout2: identity in eval)

    # (Bblk*L2, Cp) -> (Bblk, L2, Cp); layout-preserving split of leading dims.
    o_ref[...] = h.reshape(Bblk, L2, Cp)


# -----------------------------------------------------------------------------
# Generation-aware defaults (robust to missing introspection attributes).
# -----------------------------------------------------------------------------
def _default_batch_tiles(B):
    n_tc = 1
    try:
        dev = jax.devices()[0]
        n_tc = int(getattr(dev, "num_cores", 0) or 0)
        if n_tc <= 0:
            kind = str(getattr(dev, "device_kind", "")).lower()
            n_tc = 2 if "v7" in kind else 1
    except Exception:
        n_tc = 1
    # Single-TC chips (v5e/v6e): fully fold the batch into one grid step.
    # Multi-TC chips (v7x): split into >=2 "parallel" steps to load both TCs.
    if n_tc >= 2 and B >= 2 and B % 2 == 0:
        return 2
    return 1


def _vmem_limit_bytes():
    phys = 128 * 1024 * 1024
    try:
        info = pltpu.get_tpu_info()
        phys = int(getattr(info, "vmem_capacity_bytes", phys) or phys)
    except Exception:
        pass
    # ~48 MiB on 64 MiB-VMEM parts (v7x), ~96 MiB on 128 MiB parts (v5e/v6e),
    # with headroom for Mosaic internal scratch.
    return min(phys * 3 // 4, 96 * 1024 * 1024)


# -----------------------------------------------------------------------------
# Wrapper: parameter folding / packing + pallas_call.
# -----------------------------------------------------------------------------
def causal_cnn_forward(x_bc1l, params, *, batch_tiles=None,
                       matmul_dtype=jnp.bfloat16):
    """x_bc1l: (B, C, 1, L) float32, like the PyTorch module input.

    Returns (y, None) with y of shape (B, L//6, C), matching PyTorch's
    `x.transpose(1, 2)` output layout.
    """
    K = int(params["K"])
    eps = 1e-5

    # squeeze(2), then channels-last: (B, L, C).
    x = jnp.transpose(x_bc1l[:, :, 0, :], (0, 2, 1)).astype(jnp.float32)
    B, L, C = x.shape
    if L % 6 != 0:
        raise ValueError("CausalCNN (CountMamba, num_tabs=1) expects L % 6 == 0")
    L1, L2 = L // 3, L // 6

    # Lane-align the channel dim so every op / store in the kernel is
    # lane-dense and the im2col concat is 128-aligned.  Padded channels carry
    # zeros through every layer and are stripped after the kernel.
    Cp = ((C + 127) // 128) * 128
    if Cp != C:
        x = jnp.pad(x, ((0, 0), (0, 0), (0, Cp - C)))

    if batch_tiles is None:
        batch_tiles = _default_batch_tiles(B)
    assert B % batch_tiles == 0, (B, batch_tiles)
    Bblk = B // batch_tiles

    # im2col-packed weights with the BN scale folded into the output channels:
    #   Wp[l, k*Cp + cin, cout] = W_l[cout, cin, k] * s_l[cout]
    # so the kernel applies only +bias (= s*(b_conv - mu) + beta) then ReLU.
    w_list, b_list = [], []
    for i in range(1, 5):
        w = params[f"w{i}"].astype(jnp.float32)            # (Cout, Cin, K)
        g = params[f"gamma{i}"].astype(jnp.float32)
        bt = params[f"beta{i}"].astype(jnp.float32)
        mu = params[f"mean{i}"].astype(jnp.float32)
        var = params[f"var{i}"].astype(jnp.float32)
        bc = params[f"b{i}"].astype(jnp.float32)
        s = g / jnp.sqrt(var + eps)
        wf = w * s[:, None, None]                          # fold BN scale
        wp = jnp.transpose(wf, (2, 1, 0))                  # (K, Cin, Cout)
        wp = jnp.pad(wp, ((0, 0), (0, Cp - C), (0, Cp - C)))
        w_list.append(wp.reshape(K * Cp, Cp))
        b_list.append(jnp.pad(s * (bc - mu) + bt, (0, Cp - C)))
    Wp = jnp.stack(w_list).astype(matmul_dtype)                 # (4, K*Cp, Cp)
    bias = jnp.stack(b_list)[:, None, :].astype(jnp.float32)    # (4, 1, Cp)

    # Advisory cost estimate: 4 im2col matmuls (2 at L rows, 2 at L/3 rows).
    flops = 2 * B * (2 * L + 2 * L1) * (K * Cp) * Cp
    bytes_accessed = (x.size * 4 + B * L2 * Cp * 4
                      + Wp.size * Wp.dtype.itemsize + bias.size * 4)

    y = pl.pallas_call(
        functools.partial(causal_cnn_kernel, K=K),
        out_shape=jax.ShapeDtypeStruct((B, L2, Cp), jnp.float32),
        grid_spec=pltpu.PrefetchScalarGridSpec(
            num_scalar_prefetch=0,
            grid=(batch_tiles,),
            in_specs=[
                pl.BlockSpec((Bblk, L, Cp), lambda g: (g, 0, 0)),        # x
                pl.BlockSpec((4, K * Cp, Cp), lambda g: (0, 0, 0)),      # weights
                pl.BlockSpec((4, 1, Cp), lambda g: (0, 0, 0)),           # bias
            ],
            out_specs=pl.BlockSpec((Bblk, L2, Cp), lambda g: (g, 0, 0)),
            scratch_shapes=[pltpu.VMEM((Bblk * L, Cp), jnp.float32)],    # pooling
        ),
        compiler_params=pltpu.CompilerParams(
            dimension_semantics=("parallel",),
            vmem_limit_bytes=_vmem_limit_bytes(),
        ),
        cost_estimate=pl.CostEstimate(
            flops=int(flops), transcendentals=0,
            bytes_accessed=int(bytes_accessed)),
    )(x, Wp, bias)

    return y[:, :, :C], None


# -----------------------------------------------------------------------------
# Independent numpy reference (mirrors PyTorch eval-mode semantics).
# -----------------------------------------------------------------------------
def reference_forward(x_bc1l, params):
    K = int(params["K"])
    eps = 1e-5
    x = np.asarray(x_bc1l, np.float64)[:, :, 0, :]   # (B, C, L)

    def conv_bn_relu(h, w, b, g, beta, mu, var):
        Bh, Ch, Lh = h.shape
        O = w.shape[0]
        hp = np.pad(h, ((0, 0), (0, 0), (K - 1, 0)))
        out = np.zeros((Bh, O, Lh))
        for k in range(K):
            out += np.einsum("bcl,oc->bol", hp[:, :, k:k + Lh], w[:, :, k])
        out += b[None, :, None]
        out = (
            g[None, :, None] * (out - mu[None, :, None])
            / np.sqrt(var[None, :, None] + eps)
            + beta[None, :, None]
        )
        return np.maximum(out, 0.0)

    def maxpool(h, k):
        Lo = h.shape[2] // k
        return h[:, :, : Lo * k].reshape(h.shape[0], h.shape[1], Lo, k).max(-1)

    p = {k: np.asarray(v, np.float64) for k, v in params.items() if k != "K"}
    h = conv_bn_relu(x, p["w1"], p["b1"], p["gamma1"], p["beta1"], p["mean1"], p["var1"])
    h = conv_bn_relu(h, p["w2"], p["b2"], p["gamma2"], p["beta2"], p["mean2"], p["var2"])
    h = maxpool(h, 3)
    h = conv_bn_relu(h, p["w3"], p["b3"], p["gamma3"], p["beta3"], p["mean3"], p["var3"])
    h = conv_bn_relu(h, p["w4"], p["b4"], p["gamma4"], p["beta4"], p["mean4"], p["var4"])
    h = maxpool(h, 2)
    return np.transpose(h, (0, 2, 1))


# -----------------------------------------------------------------------------
# Main
# -----------------------------------------------------------------------------
if __name__ == "__main__":
    B, C, L, K = 2, 8, 24, 5   # in_channels == mid_channel == C (forward requires it)

    key = jax.random.PRNGKey(0)
    keys = jax.random.split(key, 32)
    ki = iter(keys)

    params = {"K": K}
    w_scale = 1.0 / np.sqrt(C * K)
    for i in range(1, 5):
        params[f"w{i}"] = jax.random.normal(next(ki), (C, C, K), jnp.float32) * w_scale
        params[f"b{i}"] = jax.random.normal(next(ki), (C,), jnp.float32) * 0.1
        params[f"gamma{i}"] = 0.5 + jax.random.uniform(next(ki), (C,), jnp.float32)
        params[f"beta{i}"] = jax.random.normal(next(ki), (C,), jnp.float32) * 0.1
        params[f"mean{i}"] = jax.random.normal(next(ki), (C,), jnp.float32) * 0.1
        params[f"var{i}"] = 0.5 + jax.random.uniform(next(ki), (C,), jnp.float32)

    x = jax.random.normal(next(ki), (B, C, 1, L), jnp.float32)

    y_ref = reference_forward(np.asarray(x), params)

    # Exact-parity check (f32 MXU operands), fully folded batch: one grid step
    # processing both batch segments stacked along rows (exercises the
    # cross-segment masking of the rolled causal taps).
    y32, aux = causal_cnn_forward(x, params, batch_tiles=1,
                                  matmul_dtype=jnp.float32)
    y32 = jax.block_until_ready(y32)
    assert aux is None
    assert y32.shape == y_ref.shape, (y32.shape, y_ref.shape)
    np.testing.assert_allclose(np.asarray(y32), y_ref, rtol=1e-4, atol=1e-4)

    # Exact-parity check, one batch element per grid step (nseg == 1 path).
    y32b, _ = causal_cnn_forward(x, params, batch_tiles=2,
                                 matmul_dtype=jnp.float32)
    y32b = jax.block_until_ready(y32b)
    np.testing.assert_allclose(np.asarray(y32b), y_ref, rtol=1e-4, atol=1e-4)

    # Default performant path: bf16 MXU operands, generation-aware batch_tiles.
    ybf, _ = causal_cnn_forward(x, params)
    ybf = jax.block_until_ready(ybf)
    np.testing.assert_allclose(np.asarray(ybf), y_ref, rtol=5e-2, atol=5e-2)

    print("KERNEL_OK")
</pallas_src>

<mosaic_0001>
module attributes {stable_mosaic.version = 11 : i64} {
  func.func @causal_cnn_kernel(%arg0: i32, %arg1: memref<2x24x128xf32, #tpu.memory_space<vmem>>, %arg2: memref<4x640x128xf32, #tpu.memory_space<vmem>>, %arg3: memref<4x1x128xf32, #tpu.memory_space<vmem>>, %arg4: memref<2x4x128xf32, #tpu.memory_space<vmem>>, %arg5: memref<48x128xf32, #tpu.memory_space<vmem>>) attributes {dimension_semantics = [#tpu.dimension_semantics<parallel>], iteration_bounds = array<i64: 1>, scalar_prefetch = 0 : i64, scratch_operands = 1 : i64, tpu.core_type = #tpu.core_type<tc>, window_params = [{transform_indices = @transform_0, window_bounds = array<i64: 2, 24, 128>}, {pipeline_mode = #tpu.pipeline_mode<synchronous>, transform_indices = @transform_1, window_bounds = array<i64: 4, 640, 128>}, {pipeline_mode = #tpu.pipeline_mode<synchronous>, transform_indices = @transform_2, window_bounds = array<i64: 4, 1, 128>}, {transform_indices = @transform_3, window_bounds = array<i64: 2, 4, 128>}]} {
    %c0 = arith.constant 0 : index
    %c0_0 = arith.constant 0 : index
    %c0_1 = arith.constant 0 : index
    %0 = vector.load %arg1[%c0, %c0_0, %c0_1] : memref<2x24x128xf32, #tpu.memory_space<vmem>>, vector<2x24x128xf32>
    %1 = vector.shape_cast %0 : vector<2x24x128xf32> to vector<48x128xf32>
    %2 = tpu.iota {dimensions = array<i32: 0>} : vector<48x1xi32>
    %c24_i32 = arith.constant 24 : i32
    %c0_i32 = arith.constant 0 : i32
    %3 = arith.cmpi eq, %c24_i32, %c0_i32 : i32
    %c1_i32 = arith.constant 1 : i32
    %4 = arith.select %3, %c1_i32, %c24_i32 : i32
    %5 = vector.broadcast %4 : i32 to vector<48x1xi32>
    %6 = arith.remsi %2, %5 : vector<48x1xi32>
    %c0_i32_2 = arith.constant 0 : i32
    %7 = vector.broadcast %c0_i32_2 : i32 to vector<48x1xi32>
    %8 = arith.cmpi ne, %6, %7 : vector<48x1xi32>
    %c0_i32_3 = arith.constant 0 : i32
    %9 = vector.broadcast %c0_i32_3 : i32 to vector<48x1xi32>
    %10 = arith.cmpi slt, %6, %9 : vector<48x1xi32>
    %c0_i32_4 = arith.constant 0 : i32
    %11 = arith.cmpi slt, %4, %c0_i32_4 : i32
    %12 = vector.broadcast %11 : i1 to vector<48x1xi1>
    %13 = vector.broadcast %12 : vector<48x1xi1> to vector<48x1xi1>
    %14 = arith.xori %10, %13 : vector<48x1xi1>
    %15 = arith.andi %14, %8 : vector<48x1xi1>
    %16 = vector.broadcast %4 : i32 to vector<48x1xi32>
    %17 = arith.addi %6, %16 : vector<48x1xi32>
    %18 = arith.select %15, %17, %6 : vector<48x1xi1>, vector<48x1xi32>
    %c4_i32 = arith.constant 4 : i32
    %19 = tpu.dynamic_rotate %1 by %c4_i32 dim 0 : vector<48x128xf32>, i32 -> vector<48x128xf32>
    %c4_i32_5 = arith.constant 4 : i32
    %20 = vector.broadcast %c4_i32_5 : i32 to vector<48x1xi32>
    %21 = arith.cmpi slt, %18, %20 : vector<48x1xi32>
    %cst = arith.constant 0.000000e+00 : f32
    %22 = vector.shape_cast %21 : vector<48x1xi1> to vector<48x1xi1>
    %23 = vector.broadcast %22 : vector<48x1xi1> to vector<48x128xi1>
    %24 = vector.broadcast %cst : f32 to vector<48x128xf32>
    %25 = arith.select %23, %24, %19 : vector<48x128xi1>, vector<48x128xf32>
    %c3_i32 = arith.constant 3 : i32
    %26 = tpu.dynamic_rotate %1 by %c3_i32 dim 0 : vector<48x128xf32>, i32 -> vector<48x128xf32>
    %c3_i32_6 = arith.constant 3 : i32
    %27 = vector.broadcast %c3_i32_6 : i32 to vector<48x1xi32>
    %28 = arith.cmpi slt, %18, %27 : vector<48x1xi32>
    %cst_7 = arith.constant 0.000000e+00 : f32
    %29 = vector.shape_cast %28 : vector<48x1xi1> to vector<48x1xi1>
    %30 = vector.broadcast %29 : vector<48x1xi1> to vector<48x128xi1>
    %31 = vector.broadcast %cst_7 : f32 to vector<48x128xf32>
    %32 = arith.select %30, %31, %26 : vector<48x128xi1>, vector<48x128xf32>
    %c2_i32 = arith.constant 2 : i32
    %33 = tpu.dynamic_rotate %1 by %c2_i32 dim 0 : vector<48x128xf32>, i32 -> vector<48x128xf32>
    %c2_i32_8 = arith.constant 2 : i32
    %34 = vector.broadcast %c2_i32_8 : i32 to vector<48x1xi32>
    %35 = arith.cmpi slt, %18, %34 : vector<48x1xi32>
    %cst_9 = arith.constant 0.000000e+00 : f32
    %36 = vector.shape_cast %35 : vector<48x1xi1> to vector<48x1xi1>
    %37 = vector.broadcast %36 : vector<48x1xi1> to vector<48x128xi1>
    %38 = vector.broadcast %cst_9 : f32 to vector<48x128xf32>
    %39 = arith.select %37, %38, %33 : vector<48x128xi1>, vector<48x128xf32>
    %c1_i32_10 = arith.constant 1 : i32
    %40 = tpu.dynamic_rotate %1 by %c1_i32_10 dim 0 : vector<48x128xf32>, i32 -> vector<48x128xf32>
    %c1_i32_11 = arith.constant 1 : i32
    %41 = vector.broadcast %c1_i32_11 : i32 to vector<48x1xi32>
    %42 = arith.cmpi slt, %18, %41 : vector<48x1xi32>
    %cst_12 = arith.constant 0.000000e+00 : f32
    %43 = vector.shape_cast %42 : vector<48x1xi1> to vector<48x1xi1>
    %44 = vector.broadcast %43 : vector<48x1xi1> to vector<48x128xi1>
    %45 = vector.broadcast %cst_12 : f32 to vector<48x128xf32>
    %46 = arith.select %44, %45, %40 : vector<48x128xi1>, vector<48x128xf32>
    %47 = tpu.concatenate %25, %32, %39, %46, %1 in 1 : vector<48x128xf32>, vector<48x128xf32>, vector<48x128xf32>, vector<48x128xf32>, vector<48x128xf32> -> vector<48x640xf32>
    %c0_13 = arith.constant 0 : index
    %c0_14 = arith.constant 0 : index
    %c0_15 = arith.constant 0 : index
    %48 = vector.load %arg2[%c0_13, %c0_14, %c0_15] : memref<4x640x128xf32, #tpu.memory_space<vmem>>, vector<1x640x128xf32>
    %49 = vector.shape_cast %48 : vector<1x640x128xf32> to vector<640x128xf32>
    %cst_16 = arith.constant dense<0.000000e+00> : vector<48x128xf32>
    %50 = tpu.matmul %47, %49, %cst_16 {dimension_numbers = #tpu.dot_dimension_numbers<[1], [0], [0], [1], [0, 0, 1, 1], [], []>} : vector<48x640xf32>, vector<640x128xf32>, vector<48x128xf32> -> vector<48x128xf32>
    %c0_17 = arith.constant 0 : index
    %c0_18 = arith.constant 0 : index
    %c0_19 = arith.constant 0 : index
    %51 = vector.load %arg3[%c0_17, %c0_18, %c0_19] : memref<4x1x128xf32, #tpu.memory_space<vmem>>, vector<1x1x128xf32>
    %52 = vector.shape_cast %51 : vector<1x1x128xf32> to vector<1x128xf32>
    %53 = vector.broadcast %52 : vector<1x128xf32> to vector<48x128xf32>
    %54 = arith.addf %50, %53 : vector<48x128xf32>
    %cst_20 = arith.constant 0.000000e+00 : f32
    %55 = vector.broadcast %cst_20 : f32 to vector<48x128xf32>
    %56 = arith.maximumf %54, %55 : vector<48x128xf32>
    %57 = tpu.iota {dimensions = array<i32: 0>} : vector<48x1xi32>
    %c24_i32_21 = arith.constant 24 : i32
    %c0_i32_22 = arith.constant 0 : i32
    %58 = arith.cmpi eq, %c24_i32_21, %c0_i32_22 : i32
    %c1_i32_23 = arith.constant 1 : i32
    %59 = arith.select %58, %c1_i32_23, %c24_i32_21 : i32
    %60 = vector.broadcast %59 : i32 to vector<48x1xi32>
    %61 = arith.remsi %57, %60 : vector<48x1xi32>
    %c0_i32_24 = arith.constant 0 : i32
    %62 = vector.broadcast %c0_i32_24 : i32 to vector<48x1xi32>
    %63 = arith.cmpi ne, %61, %62 : vector<48x1xi32>
    %c0_i32_25 = arith.constant 0 : i32
    %64 = vector.broadcast %c0_i32_25 : i32 to vector<48x1xi32>
    %65 = arith.cmpi slt, %61, %64 : vector<48x1xi32>
    %c0_i32_26 = arith.constant 0 : i32
    %66 = arith.cmpi slt, %59, %c0_i32_26 : i32
    %67 = vector.broadcast %66 : i1 to vector<48x1xi1>
    %68 = vector.broadcast %67 : vector<48x1xi1> to vector<48x1xi1>
    %69 = arith.xori %65, %68 : vector<48x1xi1>
    %70 = arith.andi %69, %63 : vector<48x1xi1>
    %71 = vector.broadcast %59 : i32 to vector<48x1xi32>
    %72 = arith.addi %61, %71 : vector<48x1xi32>
    %73 = arith.select %70, %72, %61 : vector<48x1xi1>, vector<48x1xi32>
    %c4_i32_27 = arith.constant 4 : i32
    %74 = tpu.dynamic_rotate %56 by %c4_i32_27 dim 0 : vector<48x128xf32>, i32 -> vector<48x128xf32>
    %c4_i32_28 = arith.constant 4 : i32
    %75 = vector.broadcast %c4_i32_28 : i32 to vector<48x1xi32>
    %76 = arith.cmpi slt, %73, %75 : vector<48x1xi32>
    %cst_29 = arith.constant 0.000000e+00 : f32
    %77 = vector.shape_cast %76 : vector<48x1xi1> to vector<48x1xi1>
    %78 = vector.broadcast %77 : vector<48x1xi1> to vector<48x128xi1>
    %79 = vector.broadcast %cst_29 : f32 to vector<48x128xf32>
    %80 = arith.select %78, %79, %74 : vector<48x128xi1>, vector<48x128xf32>
    %c3_i32_30 = arith.constant 3 : i32
    %81 = tpu.dynamic_rotate %56 by %c3_i32_30 dim 0 : vector<48x128xf32>, i32 -> vector<48x128xf32>
    %c3_i32_31 = arith.constant 3 : i32
    %82 = vector.broadcast %c3_i32_31 : i32 to vector<48x1xi32>
    %83 = arith.cmpi slt, %73, %82 : vector<48x1xi32>
    %cst_32 = arith.constant 0.000000e+00 : f32
    %84 = vector.shape_cast %83 : vector<48x1xi1> to vector<48x1xi1>
    %85 = vector.broadcast %84 : vector<48x1xi1> to vector<48x128xi1>
    %86 = vector.broadcast %cst_32 : f32 to vector<48x128xf32>
    %87 = arith.select %85, %86, %81 : vector<48x128xi1>, vector<48x128xf32>
    %c2_i32_33 = arith.constant 2 : i32
    %88 = tpu.dynamic_rotate %56 by %c2_i32_33 dim 0 : vector<48x128xf32>, i32 -> vector<48x128xf32>
    %c2_i32_34 = arith.constant 2 : i32
    %89 = vector.broadcast %c2_i32_34 : i32 to vector<48x1xi32>
    %90 = arith.cmpi slt, %73, %89 : vector<48x1xi32>
    %cst_35 = arith.constant 0.000000e+00 : f32
    %91 = vector.shape_cast %90 : vector<48x1xi1> to vector<48x1xi1>
    %92 = vector.broadcast %91 : vector<48x1xi1> to vector<48x128xi1>
    %93 = vector.broadcast %cst_35 : f32 to vector<48x128xf32>
    %94 = arith.select %92, %93, %88 : vector<48x128xi1>, vector<48x128xf32>
    %c1_i32_36 = arith.constant 1 : i32
    %95 = tpu.dynamic_rotate %56 by %c1_i32_36 dim 0 : vector<48x128xf32>, i32 -> vector<48x128xf32>
    %c1_i32_37 = arith.constant 1 : i32
    %96 = vector.broadcast %c1_i32_37 : i32 to vector<48x1xi32>
    %97 = arith.cmpi slt, %73, %96 : vector<48x1xi32>
    %cst_38 = arith.constant 0.000000e+00 : f32
    %98 = vector.shape_cast %97 : vector<48x1xi1> to vector<48x1xi1>
    %99 = vector.broadcast %98 : vector<48x1xi1> to vector<48x128xi1>
    %100 = vector.broadcast %cst_38 : f32 to vector<48x128xf32>
    %101 = arith.select %99, %100, %95 : vector<48x128xi1>, vector<48x128xf32>
    %102 = tpu.concatenate %80, %87, %94, %101, %56 in 1 : vector<48x128xf32>, vector<48x128xf32>, vector<48x128xf32>, vector<48x128xf32>, vector<48x128xf32> -> vector<48x640xf32>
    %c1 = arith.constant 1 : index
    %c0_39 = arith.constant 0 : index
    %c0_40 = arith.constant 0 : index
    %103 = vector.load %arg2[%c1, %c0_39, %c0_40] : memref<4x640x128xf32, #tpu.memory_space<vmem>>, vector<1x640x128xf32>
    %104 = vector.shape_cast %103 : vector<1x640x128xf32> to vector<640x128xf32>
    %cst_41 = arith.constant dense<0.000000e+00> : vector<48x128xf32>
    %105 = tpu.matmul %102, %104, %cst_41 {dimension_numbers = #tpu.dot_dimension_numbers<[1], [0], [0], [1], [0, 0, 1, 1], [], []>} : vector<48x640xf32>, vector<640x128xf32>, vector<48x128xf32> -> vector<48x128xf32>
    %c1_42 = arith.constant 1 : index
    %c0_43 = arith.constant 0 : index
    %c0_44 = arith.constant 0 : index
    %106 = vector.load %arg3[%c1_42, %c0_43, %c0_44] : memref<4x1x128xf32, #tpu.memory_space<vmem>>, vector<1x1x128xf32>
    %107 = vector.shape_cast %106 : vector<1x1x128xf32> to vector<1x128xf32>
    %108 = vector.broadcast %107 : vector<1x128xf32> to vector<48x128xf32>
    %109 = arith.addf %105, %108 : vector<48x128xf32>
    %cst_45 = arith.constant 0.000000e+00 : f32
    %110 = vector.broadcast %cst_45 : f32 to vector<48x128xf32>
    %111 = arith.maximumf %109, %110 : vector<48x128xf32>
    %c0_46 = arith.constant 0 : index
    %c0_47 = arith.constant 0 : index
    %112 = vector.load %arg5[%c0_46, %c0_47] : memref<48x128xf32, #tpu.memory_space<vmem>>, vector<48x128xf32>
    tpu.vector_store %arg5[%c0_46, %c0_47], %111 {strides = array<i32>} : memref<48x128xf32, #tpu.memory_space<vmem>>, vector<48x128xf32>,
    %c0_48 = arith.constant 0 : index
    %c0_49 = arith.constant 0 : index
    %113 = tpu.strided_load %arg5[%c0_48, %c0_49] {strides = array<i32: 3, 1>} : memref<48x128xf32, #tpu.memory_space<vmem>>, vector<16x128xf32>
    %c1_50 = arith.constant 1 : index
    %c0_51 = arith.constant 0 : index
    %114 = tpu.strided_load %arg5[%c1_50, %c0_51] {strides = array<i32: 3, 1>} : memref<48x128xf32, #tpu.memory_space<vmem>>, vector<16x128xf32>
    %115 = arith.maximumf %113, %114 : vector<16x128xf32>
    %c2 = arith.constant 2 : index
    %c0_52 = arith.constant 0 : index
    %116 = tpu.strided_load %arg5[%c2, %c0_52] {strides = array<i32: 3, 1>} : memref<48x128xf32, #tpu.memory_space<vmem>>, vector<16x128xf32>
    %117 = arith.maximumf %115, %116 : vector<16x128xf32>
    %118 = tpu.iota {dimensions = array<i32: 0>} : vector<16x1xi32>
    %c8_i32 = arith.constant 8 : i32
    %c0_i32_53 = arith.constant 0 : i32
    %119 = arith.cmpi eq, %c8_i32, %c0_i32_53 : i32
    %c1_i32_54 = arith.constant 1 : i32
    %120 = arith.select %119, %c1_i32_54, %c8_i32 : i32
    %121 = vector.broadcast %120 : i32 to vector<16x1xi32>
    %122 = arith.remsi %118, %121 : vector<16x1xi32>
    %c0_i32_55 = arith.constant 0 : i32
    %123 = vector.broadcast %c0_i32_55 : i32 to vector<16x1xi32>
    %124 = arith.cmpi ne, %122, %123 : vector<16x1xi32>
    %c0_i32_56 = arith.constant 0 : i32
    %125 = vector.broadcast %c0_i32_56 : i32 to vector<16x1xi32>
    %126 = arith.cmpi slt, %122, %125 : vector<16x1xi32>
    %c0_i32_57 = arith.constant 0 : i32
    %127 = arith.cmpi slt, %120, %c0_i32_57 : i32
    %128 = vector.broadcast %127 : i1 to vector<16x1xi1>
    %129 = vector.broadcast %128 : vector<16x1xi1> to vector<16x1xi1>
    %130 = arith.xori %126, %129 : vector<16x1xi1>
    %131 = arith.andi %130, %124 : vector<16x1xi1>
    %132 = vector.broadcast %120 : i32 to vector<16x1xi32>
    %133 = arith.addi %122, %132 : vector<16x1xi32>
    %134 = arith.select %131, %133, %122 : vector<16x1xi1>, vector<16x1xi32>
    %c4_i32_58 = arith.constant 4 : i32
    %135 = tpu.dynamic_rotate %117 by %c4_i32_58 dim 0 : vector<16x128xf32>, i32 -> vector<16x128xf32>
    %c4_i32_59 = arith.constant 4 : i32
    %136 = vector.broadcast %c4_i32_59 : i32 to vector<16x1xi32>
    %137 = arith.cmpi slt, %134, %136 : vector<16x1xi32>
    %cst_60 = arith.constant 0.000000e+00 : f32
    %138 = vector.shape_cast %137 : vector<16x1xi1> to vector<16x1xi1>
    %139 = vector.broadcast %138 : vector<16x1xi1> to vector<16x128xi1>
    %140 = vector.broadcast %cst_60 : f32 to vector<16x128xf32>
    %141 = arith.select %139, %140, %135 : vector<16x128xi1>, vector<16x128xf32>
    %c3_i32_61 = arith.constant 3 : i32
    %142 = tpu.dynamic_rotate %117 by %c3_i32_61 dim 0 : vector<16x128xf32>, i32 -> vector<16x128xf32>
    %c3_i32_62 = arith.constant 3 : i32
    %143 = vector.broadcast %c3_i32_62 : i32 to vector<16x1xi32>
    %144 = arith.cmpi slt, %134, %143 : vector<16x1xi32>
    %cst_63 = arith.constant 0.000000e+00 : f32
    %145 = vector.shape_cast %144 : vector<16x1xi1> to vector<16x1xi1>
    %146 = vector.broadcast %145 : vector<16x1xi1> to vector<16x128xi1>
    %147 = vector.broadcast %cst_63 : f32 to vector<16x128xf32>
    %148 = arith.select %146, %147, %142 : vector<16x128xi1>, vector<16x128xf32>
    %c2_i32_64 = arith.constant 2 : i32
    %149 = tpu.dynamic_rotate %117 by %c2_i32_64 dim 0 : vector<16x128xf32>, i32 -> vector<16x128xf32>
    %c2_i32_65 = arith.constant 2 : i32
    %150 = vector.broadcast %c2_i32_65 : i32 to vector<16x1xi32>
    %151 = arith.cmpi slt, %134, %150 : vector<16x1xi32>
    %cst_66 = arith.constant 0.000000e+00 : f32
    %152 = vector.shape_cast %151 : vector<16x1xi1> to vector<16x1xi1>
    %153 = vector.broadcast %152 : vector<16x1xi1> to vector<16x128xi1>
    %154 = vector.broadcast %cst_66 : f32 to vector<16x128xf32>
    %155 = arith.select %153, %154, %149 : vector<16x128xi1>, vector<16x128xf32>
    %c1_i32_67 = arith.constant 1 : i32
    %156 = tpu.dynamic_rotate %117 by %c1_i32_67 dim 0 : vector<16x128xf32>, i32 -> vector<16x128xf32>
    %c1_i32_68 = arith.constant 1 : i32
    %157 = vector.broadcast %c1_i32_68 : i32 to vector<16x1xi32>
    %158 = arith.cmpi slt, %134, %157 : vector<16x1xi32>
    %cst_69 = arith.constant 0.000000e+00 : f32
    %159 = vector.shape_cast %158 : vector<16x1xi1> to vector<16x1xi1>
    %160 = vector.broadcast %159 : vector<16x1xi1> to vector<16x128xi1>
    %161 = vector.broadcast %cst_69 : f32 to vector<16x128xf32>
    %162 = arith.select %160, %161, %156 : vector<16x128xi1>, vector<16x128xf32>
    %163 = tpu.concatenate %141, %148, %155, %162, %117 in 1 : vector<16x128xf32>, vector<16x128xf32>, vector<16x128xf32>, vector<16x128xf32>, vector<16x128xf32> -> vector<16x640xf32>
    %c2_70 = arith.constant 2 : index
    %c0_71 = arith.constant 0 : index
    %c0_72 = arith.constant 0 : index
    %164 = vector.load %arg2[%c2_70, %c0_71, %c0_72] : memref<4x640x128xf32, #tpu.memory_space<vmem>>, vector<1x640x128xf32>
    %165 = vector.shape_cast %164 : vector<1x640x128xf32> to vector<640x128xf32>
    %cst_73 = arith.constant dense<0.000000e+00> : vector<16x128xf32>
    %166 = tpu.matmul %163, %165, %cst_73 {dimension_numbers = #tpu.dot_dimension_numbers<[1], [0], [0], [1], [0, 0, 1, 1], [], []>} : vector<16x640xf32>, vector<640x128xf32>, vector<16x128xf32> -> vector<16x128xf32>
    %c2_74 = arith.constant 2 : index
    %c0_75 = arith.constant 0 : index
    %c0_76 = arith.constant 0 : index
    %167 = vector.load %arg3[%c2_74, %c0_75, %c0_76] : memref<4x1x128xf32, #tpu.memory_space<vmem>>, vector<1x1x128xf32>
    %168 = vector.shape_cast %167 : vector<1x1x128xf32> to vector<1x128xf32>
    %169 = vector.broadcast %168 : vector<1x128xf32> to vector<16x128xf32>
    %170 = arith.addf %166, %169 : vector<16x128xf32>
    %cst_77 = arith.constant 0.000000e+00 : f32
    %171 = vector.broadcast %cst_77 : f32 to vector<16x128xf32>
    %172 = arith.maximumf %170, %171 : vector<16x128xf32>
    %173 = tpu.iota {dimensions = array<i32: 0>} : vector<16x1xi32>
    %c8_i32_78 = arith.constant 8 : i32
    %c0_i32_79 = arith.constant 0 : i32
    %174 = arith.cmpi eq, %c8_i32_78, %c0_i32_79 : i32
    %c1_i32_80 = arith.constant 1 : i32
    %175 = arith.select %174, %c1_i32_80, %c8_i32_78 : i32
    %176 = vector.broadcast %175 : i32 to vector<16x1xi32>
    %177 = arith.remsi %173, %176 : vector<16x1xi32>
    %c0_i32_81 = arith.constant 0 : i32
    %178 = vector.broadcast %c0_i32_81 : i32 to vector<16x1xi32>
    %179 = arith.cmpi ne, %177, %178 : vector<16x1xi32>
    %c0_i32_82 = arith.constant 0 : i32
    %180 = vector.broadcast %c0_i32_82 : i32 to vector<16x1xi32>
    %181 = arith.cmpi slt, %177, %180 : vector<16x1xi32>
    %c0_i32_83 = arith.constant 0 : i32
    %182 = arith.cmpi slt, %175, %c0_i32_83 : i32
    %183 = vector.broadcast %182 : i1 to vector<16x1xi1>
    %184 = vector.broadcast %183 : vector<16x1xi1> to vector<16x1xi1>
    %185 = arith.xori %181, %184 : vector<16x1xi1>
    %186 = arith.andi %185, %179 : vector<16x1xi1>
    %187 = vector.broadcast %175 : i32 to vector<16x1xi32>
    %188 = arith.addi %177, %187 : vector<16x1xi32>
    %189 = arith.select %186, %188, %177 : vector<16x1xi1>, vector<16x1xi32>
    %c4_i32_84 = arith.constant 4 : i32
    %190 = tpu.dynamic_rotate %172 by %c4_i32_84 dim 0 : vector<16x128xf32>, i32 -> vector<16x128xf32>
    %c4_i32_85 = arith.constant 4 : i32
    %191 = vector.broadcast %c4_i32_85 : i32 to vector<16x1xi32>
    %192 = arith.cmpi slt, %189, %191 : vector<16x1xi32>
    %cst_86 = arith.constant 0.000000e+00 : f32
    %193 = vector.shape_cast %192 : vector<16x1xi1> to vector<16x1xi1>
    %194 = vector.broadcast %193 : vector<16x1xi1> to vector<16x128xi1>
    %195 = vector.broadcast %cst_86 : f32 to vector<16x128xf32>
    %196 = arith.select %194, %195, %190 : vector<16x128xi1>, vector<16x128xf32>
    %c3_i32_87 = arith.constant 3 : i32
    %197 = tpu.dynamic_rotate %172 by %c3_i32_87 dim 0 : vector<16x128xf32>, i32 -> vector<16x128xf32>
    %c3_i32_88 = arith.constant 3 : i32
    %198 = vector.broadcast %c3_i32_88 : i32 to vector<16x1xi32>
    %199 = arith.cmpi slt, %189, %198 : vector<16x1xi32>
    %cst_89 = arith.constant 0.000000e+00 : f32
    %200 = vector.shape_cast %199 : vector<16x1xi1> to vector<16x1xi1>
    %201 = vector.broadcast %200 : vector<16x1xi1> to vector<16x128xi1>
    %202 = vector.broadcast %cst_89 : f32 to vector<16x128xf32>
    %203 = arith.select %201, %202, %197 : vector<16x128xi1>, vector<16x128xf32>
    %c2_i32_90 = arith.constant 2 : i32
    %204 = tpu.dynamic_rotate %172 by %c2_i32_90 dim 0 : vector<16x128xf32>, i32 -> vector<16x128xf32>
    %c2_i32_91 = arith.constant 2 : i32
    %205 = vector.broadcast %c2_i32_91 : i32 to vector<16x1xi32>
    %206 = arith.cmpi slt, %189, %205 : vector<16x1xi32>
    %cst_92 = arith.constant 0.000000e+00 : f32
    %207 = vector.shape_cast %206 : vector<16x1xi1> to vector<16x1xi1>
    %208 = vector.broadcast %207 : vector<16x1xi1> to vector<16x128xi1>
    %209 = vector.broadcast %cst_92 : f32 to vector<16x128xf32>
    %210 = arith.select %208, %209, %204 : vector<16x128xi1>, vector<16x128xf32>
    %c1_i32_93 = arith.constant 1 : i32
    %211 = tpu.dynamic_rotate %172 by %c1_i32_93 dim 0 : vector<16x128xf32>, i32 -> vector<16x128xf32>
    %c1_i32_94 = arith.constant 1 : i32
    %212 = vector.broadcast %c1_i32_94 : i32 to vector<16x1xi32>
    %213 = arith.cmpi slt, %189, %212 : vector<16x1xi32>
    %cst_95 = arith.constant 0.000000e+00 : f32
    %214 = vector.shape_cast %213 : vector<16x1xi1> to vector<16x1xi1>
    %215 = vector.broadcast %214 : vector<16x1xi1> to vector<16x128xi1>
    %216 = vector.broadcast %cst_95 : f32 to vector<16x128xf32>
    %217 = arith.select %215, %216, %211 : vector<16x128xi1>, vector<16x128xf32>
    %218 = tpu.concatenate %196, %203, %210, %217, %172 in 1 : vector<16x128xf32>, vector<16x128xf32>, vector<16x128xf32>, vector<16x128xf32>, vector<16x128xf32> -> vector<16x640xf32>
    %c3 = arith.constant 3 : index
    %c0_96 = arith.constant 0 : index
    %c0_97 = arith.constant 0 : index
    %219 = vector.load %arg2[%c3, %c0_96, %c0_97] : memref<4x640x128xf32, #tpu.memory_space<vmem>>, vector<1x640x128xf32>
    %220 = vector.shape_cast %219 : vector<1x640x128xf32> to vector<640x128xf32>
    %cst_98 = arith.constant dense<0.000000e+00> : vector<16x128xf32>
    %221 = tpu.matmul %218, %220, %cst_98 {dimension_numbers = #tpu.dot_dimension_numbers<[1], [0], [0], [1], [0, 0, 1, 1], [], []>} : vector<16x640xf32>, vector<640x128xf32>, vector<16x128xf32> -> vector<16x128xf32>
    %c3_99 = arith.constant 3 : index
    %c0_100 = arith.constant 0 : index
    %c0_101 = arith.constant 0 : index
    %222 = vector.load %arg3[%c3_99, %c0_100, %c0_101] : memref<4x1x128xf32, #tpu.memory_space<vmem>>, vector<1x1x128xf32>
    %223 = vector.shape_cast %222 : vector<1x1x128xf32> to vector<1x128xf32>
    %224 = vector.broadcast %223 : vector<1x128xf32> to vector<16x128xf32>
    %225 = arith.addf %221, %224 : vector<16x128xf32>
    %cst_102 = arith.constant 0.000000e+00 : f32
    %226 = vector.broadcast %cst_102 : f32 to vector<16x128xf32>
    %227 = arith.maximumf %225, %226 : vector<16x128xf32>
    %c0_103 = arith.constant 0 : index
    %c0_104 = arith.constant 0 : index
    %228 = vector.load %arg5[%c0_103, %c0_104] : memref<48x128xf32, #tpu.memory_space<vmem>>, vector<16x128xf32>
    tpu.vector_store %arg5[%c0_103, %c0_104], %227 {strides = array<i32>} : memref<48x128xf32, #tpu.memory_space<vmem>>, vector<16x128xf32>,
    %c0_105 = arith.constant 0 : index
    %c0_106 = arith.constant 0 : index
    %229 = tpu.strided_load %arg5[%c0_105, %c0_106] {strides = array<i32: 2, 1>} : memref<48x128xf32, #tpu.memory_space<vmem>>, vector<8x128xf32>
    %c1_107 = arith.constant 1 : index
    %c0_108 = arith.constant 0 : index
    %230 = tpu.strided_load %arg5[%c1_107, %c0_108] {strides = array<i32: 2, 1>} : memref<48x128xf32, #tpu.memory_space<vmem>>, vector<8x128xf32>
    %231 = arith.maximumf %229, %230 : vector<8x128xf32>
    %232 = vector.shape_cast %231 : vector<8x128xf32> to vector<2x4x128xf32>
    %c0_109 = arith.constant 0 : index
    %c0_110 = arith.constant 0 : index
    %c0_111 = arith.constant 0 : index
    %233 = vector.load %arg4[%c0_109, %c0_110, %c0_111] : memref<2x4x128xf32, #tpu.memory_space<vmem>>, vector<2x4x128xf32>
    tpu.vector_store %arg4[%c0_109, %c0_110, %c0_111], %232 {strides = array<i32>} : memref<2x4x128xf32, #tpu.memory_space<vmem>>, vector<2x4x128xf32>,
    return
  }
  func.func @transform_0(%arg0: i32) -> (i32, i32, i32) {
    %c0_i32 = arith.constant 0 : i32
    %c0_i32_0 = arith.constant 0 : i32
    %c0_i32_1 = arith.constant 0 : i32
    return %arg0, %c0_i32, %c0_i32_0 : i32, i32, i32
  }
  func.func @transform_1(%arg0: i32) -> (i32, i32, i32) {
    %c0_i32 = arith.constant 0 : i32
    %c0_i32_0 = arith.constant 0 : i32
    %c0_i32_1 = arith.constant 0 : i32
    %c0_i32_2 = arith.constant 0 : i32
    return %c0_i32, %c0_i32_0, %c0_i32_1 : i32, i32, i32
  }
  func.func @transform_2(%arg0: i32) -> (i32, i32, i32) {
    %c0_i32 = arith.constant 0 : i32
    %c0_i32_0 = arith.constant 0 : i32
    %c0_i32_1 = arith.constant 0 : i32
    %c0_i32_2 = arith.constant 0 : i32
    return %c0_i32, %c0_i32_0, %c0_i32_1 : i32, i32, i32
  }
  func.func @transform_3(%arg0: i32) -> (i32, i32, i32) {
    %c0_i32 = arith.constant 0 : i32
    %c0_i32_0 = arith.constant 0 : i32
    %c0_i32_1 = arith.constant 0 : i32
    return %arg0, %c0_i32, %c0_i32_0 : i32, i32, i32
  }
}

</mosaic_0001>

<llo_original>
// kernel: tpu_custom_call.1
$region0: #{tpu_custom_call.1}
  #allocation0 [shape = 'u32[]', space=smem, size = 0x4, offset = 0x4, fixed_abs, tag = 'smem constant byte address 0x4 - core index']
  #allocation1 [shape = 'u32[72,128]{1,0:T(1,128)}', space=vmem, size = 0x9000, scoped, tag = 'internal scratch']
  #allocation2 [shape = 'f32[48,128]{1,0:T(8,128)}', space=vmem, size = 0x6000, scoped, tag = 'scratch operand']
  %s0 = inlined_call_operand.hbm [shape: f32[2,24,128], index: 0, kind: input, shape index: {}]
  %s1 = inlined_call_operand.hbm [shape: f32[4,640,128], index: 1, kind: input, shape index: {}]
  %s2 = inlined_call_operand.hbm [shape: f32[4,1,128], index: 2, kind: input, shape index: {}]
  %s3 = inlined_call_operand.hbm [shape: f32[2,4,128], index: 3, kind: output, shape index: {}]
  %s4 = sld [smem:[#allocation0]]
  $region34: #{tpu_custom_call.1} parent=0
    _
  %s6 = ssub.s32 1, %s4
  %s7 = scalar_select 0, %s6, %s4
  $region1: #{tpu_custom_call.1} parent=0
    #allocation3 [shape = 'u8[24576]{0}', space=vmem, size = 0x6000, scoped, tag = 'input window, operand 0, single buffered']
    #allocation4 [shape = 's32[1]{0}', space=sflag, size = 0x4, scoped, tag = 'scoped memory for tpu_custom_call.1']
    #allocation5 [shape = 's32[1]{0}', space=sflag, size = 0x4, scoped, tag = 'scoped memory for tpu_custom_call.1']
    #allocation6 [shape = 'u8[1310720]{0}', space=vmem, size = 0x140000, scoped, tag = 'input window, operand 1, single buffered']
    #allocation7 [shape = 's32[1]{0}', space=sflag, size = 0x4, scoped, tag = 'scoped memory for tpu_custom_call.1']
    #allocation8 [shape = 'u8[2048]{0}', space=vmem, size = 0x800, scoped, tag = 'input window, operand 2, single buffered']
    #allocation9 [shape = 'u8[4096]{0}', space=vmem, size = 0x1000, scoped, tag = 'output window, operand 0, single buffered']
    %8 = vsyncpa [#allocation4], 0
    %9 = vsyncpa [#allocation7], 0
    %10 = vsyncpa [#allocation5], 0
    // Predicated region
    $region2: #{tpu_custom_call.1} parent=1 // pred_check
      _
    $region3: #{tpu_custom_call.1} parent=1 // pred_check_branch
      %12 = sbr.rel (0) target = $region5
    $region4: #{tpu_custom_call.1} parent=1 // pred_region
      %14 = vsyncadd [#allocation4], 0
      %s15 = sshll.u32 %s0, 4
      %s16 = int_to_ptr.hbm [resolvable:$true] %s15
      %s17 = sshll.u32 [#allocation3], 4
      %s18 = int_to_ptr.vmem [resolvable:$true] %s17
      %23 = dma.hbm_to_vmem [thread:$0]  %s16, 768, %s18, [#allocation4], 128, 128, 8
    $region5: #{tpu_custom_call.1} parent=1 // pred_fallthru
      _
    // Predicated region
    $region6: #{tpu_custom_call.1} parent=1 // pred_check
      _
    $region7: #{tpu_custom_call.1} parent=1 // pred_check_branch
      %25 = sbr.rel (0) target = $region9
    $region8: #{tpu_custom_call.1} parent=1 // pred_region
      %27 = vsyncadd [#allocation7], 0
      %s28 = sshll.u32 %s1, 4
      %s29 = int_to_ptr.hbm [resolvable:$true] %s28
      %s30 = sshll.u32 [#allocation6], 4
      %s31 = int_to_ptr.vmem [resolvable:$true] %s30
      %36 = dma.hbm_to_vmem [thread:$0]  %s29, 40960, %s31, [#allocation7], 128, 128, 8
    $region9: #{tpu_custom_call.1} parent=1 // pred_fallthru
      _
    // Predicated region
    $region10: #{tpu_custom_call.1} parent=1 // pred_check
      _
    $region11: #{tpu_custom_call.1} parent=1 // pred_check_branch
      %38 = sbr.rel (0) target = $region13
    $region12: #{tpu_custom_call.1} parent=1 // pred_region
      %40 = vsyncadd [#allocation7], 0
      %s41 = sshll.u32 %s2, 4
      %s42 = int_to_ptr.hbm [resolvable:$true] %s41
      %s43 = sshll.u32 [#allocation8], 4
      %s44 = int_to_ptr.vmem [resolvable:$true] %s43
      %49 = dma.hbm_to_vmem [thread:$0]  %s42, 64, %s44, [#allocation7], 16, 16, 1
    $region13: #{tpu_custom_call.1} parent=1 // pred_fallthru
      _
    // Predicated region
    $region14: #{tpu_custom_call.1} parent=1 // pred_check
      _
    $region15: #{tpu_custom_call.1} parent=1 // pred_check_branch
      %51 = sbr.rel (0) target = $region17
    $region16: #{tpu_custom_call.1} parent=1 // pred_region
      %53 = dma.done [#allocation4], 768
    $region17: #{tpu_custom_call.1} parent=1 // pred_fallthru
      _
    // Predicated region
    $region18: #{tpu_custom_call.1} parent=1 // pred_check
      _
    $region19: #{tpu_custom_call.1} parent=1 // pred_check_branch
      %55 = sbr.rel (0) target = $region21
    $region20: #{tpu_custom_call.1} parent=1 // pred_region
      %57 = dma.done [#allocation7], 40960
    $region21: #{tpu_custom_call.1} parent=1 // pred_fallthru
      _
    // Predicated region
    $region22: #{tpu_custom_call.1} parent=1 // pred_check
      _
    $region23: #{tpu_custom_call.1} parent=1 // pred_check_branch
      %59 = sbr.rel (0) target = $region25
    $region24: #{tpu_custom_call.1} parent=1 // pred_region
      %61 = dma.done [#allocation7], 64
    $region25: #{tpu_custom_call.1} parent=1 // pred_fallthru
      _
    %v62 = vld [vmem:[#allocation3] sm:$0xff]
    %v63 = vld [vmem:[#allocation3 + $0x8] sm:$0xff]
    %v64 = vld [vmem:[#allocation3 + $0x10] sm:$0xff]
    %v65 = vld [vmem:[#allocation3 + $0x18] sm:$0xff]
    %v66 = vld [vmem:[#allocation3 + $0x20] sm:$0xff]
    %v67 = vld [vmem:[#allocation3 + $0x28] sm:$0xff]
    %v68 = vlaneseq
    %v69 = vshrl.u32 %v68, 7
    %v70 = vadd.s32 %v69, 8
    %v71 = vadd.s32 %v69, 16
    %v72 = vadd.s32 %v69, 24
    %v73 = vadd.s32 %v69, 32
    %v74 = vadd.s32 %v69, 40
    %vm75 = vcmp.lt.s32.totalorder %v69, 0
    %v76 = vsub.s32 0, %v69
    %v77 = vsel %vm75, %v76, %v69
    %v78 = vand.u32 %v77, 65535
    %v79 = vshrl.u32 %v77, 16
    %v81 = vmul.u32 %v78, 43691
    %v82 = vmul.u32 %v78, 43690
    %v83 = vmul.u32 %v79, 43691
    %v84 = vmul.u32 %v79, 43690
    %v85 = vshll.u32 %v82, 16
    %v86 = vshrl.u32 %v82, 16
    %v87 = vshll.u32 %v83, 16
    %v88 = vshrl.u32 %v83, 16
    %vm89 = vc.u32 %v81, %v85
    %v90 = vsel %vm89, 1, 0
    %v91 = vadd.s32 %v81, %v85
    %v92 = vadd.s32 %v84, %v90
    %vm93 = vc.u32 %v91, %v87
    %v94 = vsel %vm93, 1, 0
    %v95 = vadd.s32 %v91, %v87
    %v96 = vadd.s32 %v92, %v94
    %v97 = vadd.s32 %v96, %v86
    %v98 = vadd.s32 %v97, %v88
    %v99 = vshrl.u32 %v98, 4
    %v100 = vmul.u32 %v99, 24
    %v101 = vsub.s32 %v77, %v100
    %v102 = vsub.s32 0, %v101
    %v103 = vsel %vm75, %v102, %v101
    %vm104 = vcmp.lt.s32.totalorder %v70, 0
    %v105 = vsub.s32 0, %v70
    %v106 = vsel %vm104, %v105, %v70
    %v107 = vand.u32 %v106, 65535
    %v108 = vshrl.u32 %v106, 16
    %v110 = vmul.u32 %v107, 43691
    %v111 = vmul.u32 %v107, 43690
    %v112 = vmul.u32 %v108, 43691
    %v113 = vmul.u32 %v108, 43690
    %v114 = vshll.u32 %v111, 16
    %v115 = vshrl.u32 %v111, 16
    %v116 = vshll.u32 %v112, 16
    %v117 = vshrl.u32 %v112, 16
    %vm118 = vc.u32 %v110, %v114
    %v119 = vsel %vm118, 1, 0
    %v120 = vadd.s32 %v110, %v114
    %v121 = vadd.s32 %v113, %v119
    %vm122 = vc.u32 %v120, %v116
    %v123 = vsel %vm122, 1, 0
    %v124 = vadd.s32 %v120, %v116
    %v125 = vadd.s32 %v121, %v123
    %v126 = vadd.s32 %v125, %v115
    %v127 = vadd.s32 %v126, %v117
    %v128 = vshrl.u32 %v127, 4
    %v129 = vmul.u32 %v128, 24
    %v130 = vsub.s32 %v106, %v129
    %v131 = vsub.s32 0, %v130
    %v132 = vsel %vm104, %v131, %v130
    %vm133 = vcmp.lt.s32.totalorder %v71, 0
    %v134 = vsub.s32 0, %v71
    %v135 = vsel %vm133, %v134, %v71
    %v136 = vand.u32 %v135, 65535
    %v137 = vshrl.u32 %v135, 16
    %v139 = vmul.u32 %v136, 43691
    %v140 = vmul.u32 %v136, 43690
    %v141 = vmul.u32 %v137, 43691
    %v142 = vmul.u32 %v137, 43690
    %v143 = vshll.u32 %v140, 16
    %v144 = vshrl.u32 %v140, 16
    %v145 = vshll.u32 %v141, 16
    %v146 = vshrl.u32 %v141, 16
    %vm147 = vc.u32 %v139, %v143
    %v148 = vsel %vm147, 1, 0
    %v149 = vadd.s32 %v139, %v143
    %v150 = vadd.s32 %v142, %v148
    %vm151 = vc.u32 %v149, %v145
    %v152 = vsel %vm151, 1, 0
    %v153 = vadd.s32 %v149, %v145
    %v154 = vadd.s32 %v150, %v152
    %v155 = vadd.s32 %v154, %v144
    %v156 = vadd.s32 %v155, %v146
    %v157 = vshrl.u32 %v156, 4
    %v158 = vmul.u32 %v157, 24
    %v159 = vsub.s32 %v135, %v158
    %v160 = vsub.s32 0, %v159
    %v161 = vsel %vm133, %v160, %v159
    %vm162 = vcmp.lt.s32.totalorder %v72, 0
    %v163 = vsub.s32 0, %v72
    %v164 = vsel %vm162, %v163, %v72
    %v165 = vand.u32 %v164, 65535
    %v166 = vshrl.u32 %v164, 16
    %v168 = vmul.u32 %v165, 43691
    %v169 = vmul.u32 %v165, 43690
    %v170 = vmul.u32 %v166, 43691
    %v171 = vmul.u32 %v166, 43690
    %v172 = vshll.u32 %v169, 16
    %v173 = vshrl.u32 %v169, 16
    %v174 = vshll.u32 %v170, 16
    %v175 = vshrl.u32 %v170, 16
    %vm176 = vc.u32 %v168, %v172
    %v177 = vsel %vm176, 1, 0
    %v178 = vadd.s32 %v168, %v172
    %v179 = vadd.s32 %v171, %v177
    %vm180 = vc.u32 %v178, %v174
    %v181 = vsel %vm180, 1, 0
    %v182 = vadd.s32 %v178, %v174
    %v183 = vadd.s32 %v179, %v181
    %v184 = vadd.s32 %v183, %v173
    %v185 = vadd.s32 %v184, %v175
    %v186 = vshrl.u32 %v185, 4
    %v187 = vmul.u32 %v186, 24
    %v188 = vsub.s32 %v164, %v187
    %v189 = vsub.s32 0, %v188
    %v190 = vsel %vm162, %v189, %v188
    %vm191 = vcmp.lt.s32.totalorder %v73, 0
    %v192 = vsub.s32 0, %v73
    %v193 = vsel %vm191, %v192, %v73
    %v194 = vand.u32 %v193, 65535
    %v195 = vshrl.u32 %v193, 16
    %v197 = vmul.u32 %v194, 43691
    %v198 = vmul.u32 %v194, 43690
    %v199 = vmul.u32 %v195, 43691
    %v200 = vmul.u32 %v195, 43690
    %v201 = vshll.u32 %v198, 16
    %v202 = vshrl.u32 %v198, 16
    %v203 = vshll.u32 %v199, 16
    %v204 = vshrl.u32 %v199, 16
    %vm205 = vc.u32 %v197, %v201
    %v206 = vsel %vm205, 1, 0
    %v207 = vadd.s32 %v197, %v201
    %v208 = vadd.s32 %v200, %v206
    %vm209 = vc.u32 %v207, %v203
    %v210 = vsel %vm209, 1, 0
    %v211 = vadd.s32 %v207, %v203
    %v212 = vadd.s32 %v208, %v210
    %v213 = vadd.s32 %v212, %v202
    %v214 = vadd.s32 %v213, %v204
    %v215 = vshrl.u32 %v214, 4
    %v216 = vmul.u32 %v215, 24
    %v217 = vsub.s32 %v193, %v216
    %v218 = vsub.s32 0, %v217
    %v219 = vsel %vm191, %v218, %v217
    %vm220 = vcmp.lt.s32.totalorder %v74, 0
    %v221 = vsub.s32 0, %v74
    %v222 = vsel %vm220, %v221, %v74
    %v223 = vand.u32 %v222, 65535
    %v224 = vshrl.u32 %v222, 16
    %v226 = vmul.u32 %v223, 43691
    %v227 = vmul.u32 %v223, 43690
    %v228 = vmul.u32 %v224, 43691
    %v229 = vmul.u32 %v224, 43690
    %v230 = vshll.u32 %v227, 16
    %v231 = vshrl.u32 %v227, 16
    %v232 = vshll.u32 %v228, 16
    %v233 = vshrl.u32 %v228, 16
    %vm234 = vc.u32 %v226, %v230
    %v235 = vsel %vm234, 1, 0
    %v236 = vadd.s32 %v226, %v230
    %v237 = vadd.s32 %v229, %v235
    %vm238 = vc.u32 %v236, %v232
    %v239 = vsel %vm238, 1, 0
    %v240 = vadd.s32 %v236, %v232
    %v241 = vadd.s32 %v237, %v239
    %v242 = vadd.s32 %v241, %v231
    %v243 = vadd.s32 %v242, %v233
    %v244 = vshrl.u32 %v243, 4
    %v245 = vmul.u32 %v244, 24
    %v246 = vsub.s32 %v222, %v245
    %v247 = vsub.s32 0, %v246
    %v248 = vsel %vm220, %v247, %v246
    %vm249 = vcmp.ne.s32.totalorder %v103, 0
    %vm250 = vcmp.ne.s32.totalorder %v132, 0
    %vm251 = vcmp.ne.s32.totalorder %v161, 0
    %vm252 = vcmp.ne.s32.totalorder %v190, 0
    %vm253 = vcmp.ne.s32.totalorder %v219, 0
    %vm254 = vcmp.ne.s32.totalorder %v248, 0
    %vm255 = vcmp.lt.s32.totalorder %v103, 0
    %vm256 = vcmp.lt.s32.totalorder %v132, 0
    %vm257 = vcmp.lt.s32.totalorder %v161, 0
    %vm258 = vcmp.lt.s32.totalorder %v190, 0
    %vm259 = vcmp.lt.s32.totalorder %v219, 0
    %vm260 = vcmp.lt.s32.totalorder %v248, 0
    %vm261 = vmand %vm255, %vm249
    %vm262 = vmand %vm256, %vm250
    %vm263 = vmand %vm257, %vm251
    %vm264 = vmand %vm258, %vm252
    %vm265 = vmand %vm259, %vm253
    %vm266 = vmand %vm260, %vm254
    %v267 = vadd.s32 %v103, 24
    %v268 = vadd.s32 %v132, 24
    %v269 = vadd.s32 %v161, 24
    %v270 = vadd.s32 %v190, 24
    %v271 = vadd.s32 %v219, 24
    %v272 = vadd.s32 %v248, 24
    %v273 = vsel %vm261, %v267, %v103
    %v274 = vsel %vm262, %v268, %v132
    %v275 = vsel %vm263, %v269, %v161
    %v276 = vsel %vm264, %v270, %v190
    %v277 = vsel %vm265, %v271, %v219
    %v278 = vsel %vm266, %v272, %v248
    %v279 = vrot.slane %v62, 4
    %v280 = vrot.slane %v63, 4
    %v281 = vrot.slane %v64, 4
    %v282 = vrot.slane %v65, 4
    %v283 = vrot.slane %v66, 4
    %v284 = vrot.slane %v67, 4
    %vm285 = vcmp.lt.s32.totalorder %v69, 4
    %v286 = vsel %vm285, %v283, %v284
    %v287 = vsel %vm285, %v282, %v283
    %v288 = vsel %vm285, %v281, %v282
    %v289 = vsel %vm285, %v280, %v281
    %v290 = vsel %vm285, %v279, %v280
    %v291 = vsel %vm285, %v284, %v279
    %vm292 = vcmp.lt.s32.totalorder %v273, 4
    %vm293 = vcmp.lt.s32.totalorder %v274, 4
    %vm294 = vcmp.lt.s32.totalorder %v275, 4
    %vm295 = vcmp.lt.s32.totalorder %v276, 4
    %vm296 = vcmp.lt.s32.totalorder %v277, 4
    %vm297 = vcmp.lt.s32.totalorder %v278, 4
    %v298 = vsel %vm292, 1, 0
    %v299 = vsel %vm293, 1, 0
    %v300 = vsel %vm294, 1, 0
    %v301 = vsel %vm295, 1, 0
    %v302 = vsel %vm296, 1, 0
    %v303 = vsel %vm297, 1, 0
    %vm304 = vcmp.eq.s32.totalorder %v298, 1
    %vm305 = vcmp.eq.s32.totalorder %v299, 1
    %vm306 = vcmp.eq.s32.totalorder %v300, 1
    %vm307 = vcmp.eq.s32.totalorder %v301, 1
    %vm308 = vcmp.eq.s32.totalorder %v302, 1
    %vm309 = vcmp.eq.s32.totalorder %v303, 1
    %v310 = vsel %vm304, 0.0, %v291
    %v311 = vsel %vm305, 0.0, %v290
    %v312 = vsel %vm306, 0.0, %v289
    %v313 = vsel %vm307, 0.0, %v288
    %v314 = vsel %vm308, 0.0, %v287
    %v315 = vsel %vm309, 0.0, %v286
    %v316 = vrot.slane %v62, 5
    %v317 = vrot.slane %v63, 5
    %v318 = vrot.slane %v64, 5
    %v319 = vrot.slane %v65, 5
    %v320 = vrot.slane %v66, 5
    %v321 = vrot.slane %v67, 5
    %vm322 = vcmp.lt.s32.totalorder %v69, 3
    %v323 = vsel %vm322, %v320, %v321
    %v324 = vsel %vm322, %v319, %v320
    %v325 = vsel %vm322, %v318, %v319
    %v326 = vsel %vm322, %v317, %v318
    %v327 = vsel %vm322, %v316, %v317
    %v328 = vsel %vm322, %v321, %v316
    %vm329 = vcmp.lt.s32.totalorder %v273, 3
    %vm330 = vcmp.lt.s32.totalorder %v274, 3
    %vm331 = vcmp.lt.s32.totalorder %v275, 3
    %vm332 = vcmp.lt.s32.totalorder %v276, 3
    %vm333 = vcmp.lt.s32.totalorder %v277, 3
    %vm334 = vcmp.lt.s32.totalorder %v278, 3
    %v335 = vsel %vm329, 1, 0
    %v336 = vsel %vm330, 1, 0
    %v337 = vsel %vm331, 1, 0
    %v338 = vsel %vm332, 1, 0
    %v339 = vsel %vm333, 1, 0
    %v340 = vsel %vm334, 1, 0
    %vm341 = vcmp.eq.s32.totalorder %v335, 1
    %vm342 = vcmp.eq.s32.totalorder %v336, 1
    %vm343 = vcmp.eq.s32.totalorder %v337, 1
    %vm344 = vcmp.eq.s32.totalorder %v338, 1
    %vm345 = vcmp.eq.s32.totalorder %v339, 1
    %vm346 = vcmp.eq.s32.totalorder %v340, 1
    %v347 = vsel %vm341, 0.0, %v328
    %v348 = vsel %vm342, 0.0, %v327
    %v349 = vsel %vm343, 0.0, %v326
    %v350 = vsel %vm344, 0.0, %v325
    %v351 = vsel %vm345, 0.0, %v324
    %v352 = vsel %vm346, 0.0, %v323
    %v353 = vrot.slane %v62, 6
    %v354 = vrot.slane %v63, 6
    %v355 = vrot.slane %v64, 6
    %v356 = vrot.slane %v65, 6
    %v357 = vrot.slane %v66, 6
    %v358 = vrot.slane %v67, 6
    %vm359 = vcmp.lt.s32.totalorder %v69, 2
    %v360 = vsel %vm359, %v357, %v358
    %v361 = vsel %vm359, %v356, %v357
    %v362 = vsel %vm359, %v355, %v356
    %v363 = vsel %vm359, %v354, %v355
    %v364 = vsel %vm359, %v353, %v354
    %v365 = vsel %vm359, %v358, %v353
    %vm366 = vcmp.lt.s32.totalorder %v273, 2
    %vm367 = vcmp.lt.s32.totalorder %v274, 2
    %vm368 = vcmp.lt.s32.totalorder %v275, 2
    %vm369 = vcmp.lt.s32.totalorder %v276, 2
    %vm370 = vcmp.lt.s32.totalorder %v277, 2
    %vm371 = vcmp.lt.s32.totalorder %v278, 2
    %v372 = vsel %vm366, 1, 0
    %v373 = vsel %vm367, 1, 0
    %v374 = vsel %vm368, 1, 0
    %v375 = vsel %vm369, 1, 0
    %v376 = vsel %vm370, 1, 0
    %v377 = vsel %vm371, 1, 0
    %vm378 = vcmp.eq.s32.totalorder %v372, 1
    %vm379 = vcmp.eq.s32.totalorder %v373, 1
    %vm380 = vcmp.eq.s32.totalorder %v374, 1
    %vm381 = vcmp.eq.s32.totalorder %v375, 1
    %vm382 = vcmp.eq.s32.totalorder %v376, 1
    %vm383 = vcmp.eq.s32.totalorder %v377, 1
    %v384 = vsel %vm378, 0.0, %v365
    %v385 = vsel %vm379, 0.0, %v364
    %v386 = vsel %vm380, 0.0, %v363
    %v387 = vsel %vm381, 0.0, %v362
    %v388 = vsel %vm382, 0.0, %v361
    %v389 = vsel %vm383, 0.0, %v360
    %v390 = vrot.slane %v62, 7
    %v391 = vrot.slane %v63, 7
    %v392 = vrot.slane %v64, 7
    %v393 = vrot.slane %v65, 7
    %v394 = vrot.slane %v66, 7
    %v395 = vrot.slane %v67, 7
    %vm396 = vcmp.lt.s32.totalorder %v69, 1
    %v397 = vsel %vm396, %v394, %v395
    %v398 = vsel %vm396, %v393, %v394
    %v399 = vsel %vm396, %v392, %v393
    %v400 = vsel %vm396, %v391, %v392
    %v401 = vsel %vm396, %v390, %v391
    %v402 = vsel %vm396, %v395, %v390
    %vm403 = vcmp.lt.s32.totalorder %v273, 1
    %vm404 = vcmp.lt.s32.totalorder %v274, 1
    %vm405 = vcmp.lt.s32.totalorder %v275, 1
    %vm406 = vcmp.lt.s32.totalorder %v276, 1
    %vm407 = vcmp.lt.s32.totalorder %v277, 1
    %vm408 = vcmp.lt.s32.totalorder %v278, 1
    %v409 = vsel %vm403, 1, 0
    %v410 = vsel %vm404, 1, 0
    %v411 = vsel %vm405, 1, 0
    %v412 = vsel %vm406, 1, 0
    %v413 = vsel %vm407, 1, 0
    %v414 = vsel %vm408, 1, 0
    %vm415 = vcmp.eq.s32.totalorder %v409, 1
    %vm416 = vcmp.eq.s32.totalorder %v410, 1
    %vm417 = vcmp.eq.s32.totalorder %v411, 1
    %vm418 = vcmp.eq.s32.totalorder %v412, 1
    %vm419 = vcmp.eq.s32.totalorder %v413, 1
    %vm420 = vcmp.eq.s32.totalorder %v414, 1
    %v421 = vsel %vm415, 0.0, %v402
    %v422 = vsel %vm416, 0.0, %v401
    %v423 = vsel %vm417, 0.0, %v400
    %v424 = vsel %vm418, 0.0, %v399
    %v425 = vsel %vm419, 0.0, %v398
    %v426 = vsel %vm420, 0.0, %v397
    %v427 = vld [vmem:[#allocation6] sm:$0xff]
    %v428 = vld [vmem:[#allocation6 + $0x8] sm:$0xff]
    %v429 = vld [vmem:[#allocation6 + $0x10] sm:$0xff]
    %v430 = vld [vmem:[#allocation6 + $0x18] sm:$0xff]
    %v431 = vld [vmem:[#allocation6 + $0x20] sm:$0xff]
    %v432 = vld [vmem:[#allocation6 + $0x28] sm:$0xff]
    %v433 = vld [vmem:[#allocation6 + $0x30] sm:$0xff]
    %v434 = vld [vmem:[#allocation6 + $0x38] sm:$0xff]
    %v435 = vld [vmem:[#allocation6 + $0x40] sm:$0xff]
    %v436 = vld [vmem:[#allocation6 + $0x48] sm:$0xff]
    %v437 = vld [vmem:[#allocation6 + $0x50] sm:$0xff]
    %v438 = vld [vmem:[#allocation6 + $0x58] sm:$0xff]
    %v439 = vld [vmem:[#allocation6 + $0x60] sm:$0xff]
    %v440 = vld [vmem:[#allocation6 + $0x68] sm:$0xff]
    %v441 = vld [vmem:[#allocation6 + $0x70] sm:$0xff]
    %v442 = vld [vmem:[#allocation6 + $0x78] sm:$0xff]
    %v443 = vld [vmem:[#allocation6 + $0x80] sm:$0xff]
    %v444 = vld [vmem:[#allocation6 + $0x88] sm:$0xff]
    %v445 = vld [vmem:[#allocation6 + $0x90] sm:$0xff]
    %v446 = vld [vmem:[#allocation6 + $0x98] sm:$0xff]
    %v447 = vld [vmem:[#allocation6 + $0xa0] sm:$0xff]
    %v448 = vld [vmem:[#allocation6 + $0xa8] sm:$0xff]
    %v449 = vld [vmem:[#allocation6 + $0xb0] sm:$0xff]
    %v450 = vld [vmem:[#allocation6 + $0xb8] sm:$0xff]
    %v451 = vld [vmem:[#allocation6 + $0xc0] sm:$0xff]
    %v452 = vld [vmem:[#allocation6 + $0xc8] sm:$0xff]
    %v453 = vld [vmem:[#allocation6 + $0xd0] sm:$0xff]
    %v454 = vld [vmem:[#allocation6 + $0xd8] sm:$0xff]
    %v455 = vld [vmem:[#allocation6 + $0xe0] sm:$0xff]
    %v456 = vld [vmem:[#allocation6 + $0xe8] sm:$0xff]
    %v457 = vld [vmem:[#allocation6 + $0xf0] sm:$0xff]
    %v458 = vld [vmem:[#allocation6 + $0xf8] sm:$0xff]
    %v459 = vld [vmem:[#allocation6 + $0x100] sm:$0xff]
    %v460 = vld [vmem:[#allocation6 + $0x108] sm:$0xff]
    %v461 = vld [vmem:[#allocation6 + $0x110] sm:$0xff]
    %v462 = vld [vmem:[#allocation6 + $0x118] sm:$0xff]
    %v463 = vld [vmem:[#allocation6 + $0x120] sm:$0xff]
    %v464 = vld [vmem:[#allocation6 + $0x128] sm:$0xff]
    %v465 = vld [vmem:[#allocation6 + $0x130] sm:$0xff]
    %v466 = vld [vmem:[#allocation6 + $0x138] sm:$0xff]
    %v467 = vld [vmem:[#allocation6 + $0x140] sm:$0xff]
    %v468 = vld [vmem:[#allocation6 + $0x148] sm:$0xff]
    %v469 = vld [vmem:[#allocation6 + $0x150] sm:$0xff]
    %v470 = vld [vmem:[#allocation6 + $0x158] sm:$0xff]
    %v471 = vld [vmem:[#allocation6 + $0x160] sm:$0xff]
    %v472 = vld [vmem:[#allocation6 + $0x168] sm:$0xff]
    %v473 = vld [vmem:[#allocation6 + $0x170] sm:$0xff]
    %v474 = vld [vmem:[#allocation6 + $0x178] sm:$0xff]
    %v475 = vld [vmem:[#allocation6 + $0x180] sm:$0xff]
    %v476 = vld [vmem:[#allocation6 + $0x188] sm:$0xff]
    %v477 = vld [vmem:[#allocation6 + $0x190] sm:$0xff]
    %v478 = vld [vmem:[#allocation6 + $0x198] sm:$0xff]
    %v479 = vld [vmem:[#allocation6 + $0x1a0] sm:$0xff]
    %v480 = vld [vmem:[#allocation6 + $0x1a8] sm:$0xff]
    %v481 = vld [vmem:[#allocation6 + $0x1b0] sm:$0xff]
    %v482 = vld [vmem:[#allocation6 + $0x1b8] sm:$0xff]
    %v483 = vld [vmem:[#allocation6 + $0x1c0] sm:$0xff]
    %v484 = vld [vmem:[#allocation6 + $0x1c8] sm:$0xff]
    %v485 = vld [vmem:[#allocation6 + $0x1d0] sm:$0xff]
    %v486 = vld [vmem:[#allocation6 + $0x1d8] sm:$0xff]
    %v487 = vld [vmem:[#allocation6 + $0x1e0] sm:$0xff]
    %v488 = vld [vmem:[#allocation6 + $0x1e8] sm:$0xff]
    %v489 = vld [vmem:[#allocation6 + $0x1f0] sm:$0xff]
    %v490 = vld [vmem:[#allocation6 + $0x1f8] sm:$0xff]
    %v491 = vld [vmem:[#allocation6 + $0x200] sm:$0xff]
    %v492 = vld [vmem:[#allocation6 + $0x208] sm:$0xff]
    %v493 = vld [vmem:[#allocation6 + $0x210] sm:$0xff]
    %v494 = vld [vmem:[#allocation6 + $0x218] sm:$0xff]
    %v495 = vld [vmem:[#allocation6 + $0x220] sm:$0xff]
    %v496 = vld [vmem:[#allocation6 + $0x228] sm:$0xff]
    %v497 = vld [vmem:[#allocation6 + $0x230] sm:$0xff]
    %v498 = vld [vmem:[#allocation6 + $0x238] sm:$0xff]
    %v499 = vld [vmem:[#allocation6 + $0x240] sm:$0xff]
    %v500 = vld [vmem:[#allocation6 + $0x248] sm:$0xff]
    %v501 = vld [vmem:[#allocation6 + $0x250] sm:$0xff]
    %v502 = vld [vmem:[#allocation6 + $0x258] sm:$0xff]
    %v503 = vld [vmem:[#allocation6 + $0x260] sm:$0xff]
    %v504 = vld [vmem:[#allocation6 + $0x268] sm:$0xff]
    %v505 = vld [vmem:[#allocation6 + $0x270] sm:$0xff]
    %v506 = vld [vmem:[#allocation6 + $0x278] sm:$0xff]
    %v507 = vld [vmem:[#allocation8] sm:$0x1]
    %v509 = vperm.slane %v507, 0
    %511 = vmatpush.msra.mxu0 %v442
    %512 = vmatpush.msra.mxu0 %v441
    %513 = vmatpush.msra.mxu0 %v440
    %514 = vmatpush.msra.mxu0 %v439
    %515 = vmatpush.msra.mxu0 %v438
    %516 = vmatpush.msra.mxu0 %v437
    %517 = vmatpush.msra.mxu0 %v436
    %518 = vmatpush.msra.mxu0 %v435
    %519 = vmatpush.msra.mxu0 %v434
    %520 = vmatpush.msra.mxu0 %v433
    %521 = vmatpush.msra.mxu0 %v432
    %522 = vmatpush.msra.mxu0 %v431
    %523 = vmatpush.msra.mxu0 %v430
    %524 = vmatpush.msra.mxu0 %v429
    %525 = vmatpush.msra.mxu0 %v428
    %526 = vmatpush.msra.mxu0 %v427
    %527 = vmatmul.f32.gmra.mxu0 %v310
    %v528 = vpop.f32.mrf.mxu0
    %v529 = vadd.f32 %v509, %v528
    %530 = vmatmul.f32.gmra.mxu0 %v311
    %v531 = vpop.f32.mrf.mxu0
    %v532 = vadd.f32 %v509, %v531
    %533 = vmatmul.f32.gmra.mxu0 %v312
    %v534 = vpop.f32.mrf.mxu0
    %v535 = vadd.f32 %v509, %v534
    %536 = vmatmul.f32.gmra.mxu0 %v313
    %v537 = vpop.f32.mrf.mxu0
    %v538 = vadd.f32 %v509, %v537
    %539 = vmatmul.f32.gmra.mxu0 %v314
    %v540 = vpop.f32.mrf.mxu0
    %v541 = vadd.f32 %v509, %v540
    %542 = vmatmul.f32.gmra.mxu0 %v315
    %v543 = vpop.f32.mrf.mxu0
    %v544 = vadd.f32 %v509, %v543
    %545 = vdwg.mxu0
    %546 = vmatpush.msra.mxu0 %v458
    %547 = vmatpush.msra.mxu0 %v457
    %548 = vmatpush.msra.mxu0 %v456
    %549 = vmatpush.msra.mxu0 %v455
    %550 = vmatpush.msra.mxu0 %v454
    %551 = vmatpush.msra.mxu0 %v453
    %552 = vmatpush.msra.mxu0 %v452
    %553 = vmatpush.msra.mxu0 %v451
    %554 = vmatpush.msra.mxu0 %v450
    %555 = vmatpush.msra.mxu0 %v449
    %556 = vmatpush.msra.mxu0 %v448
    %557 = vmatpush.msra.mxu0 %v447
    %558 = vmatpush.msra.mxu0 %v446
    %559 = vmatpush.msra.mxu0 %v445
    %560 = vmatpush.msra.mxu0 %v444
    %561 = vmatpush.msra.mxu0 %v443
    %562 = vmatmul.f32.gmra.mxu0 %v347
    %v563 = vpop.f32.mrf.mxu0
    %v564 = vadd.f32 %v529, %v563
    %565 = vmatmul.f32.gmra.mxu0 %v348
    %v566 = vpop.f32.mrf.mxu0
    %v567 = vadd.f32 %v532, %v566
    %568 = vmatmul.f32.gmra.mxu0 %v349
    %v569 = vpop.f32.mrf.mxu0
    %v570 = vadd.f32 %v535, %v569
    %571 = vmatmul.f32.gmra.mxu0 %v350
    %v572 = vpop.f32.mrf.mxu0
    %v573 = vadd.f32 %v538, %v572
    %574 = vmatmul.f32.gmra.mxu0 %v351
    %v575 = vpop.f32.mrf.mxu0
    %v576 = vadd.f32 %v541, %v575
    %577 = vmatmul.f32.gmra.mxu0 %v352
    %v578 = vpop.f32.mrf.mxu0
    %v579 = vadd.f32 %v544, %v578
    %580 = vdwg.mxu0
    %581 = vmatpush.msra.mxu0 %v474
    %582 = vmatpush.msra.mxu0 %v473
    %583 = vmatpush.msra.mxu0 %v472
    %584 = vmatpush.msra.mxu0 %v471
    %585 = vmatpush.msra.mxu0 %v470
    %586 = vmatpush.msra.mxu0 %v469
    %587 = vmatpush.msra.mxu0 %v468
    %588 = vmatpush.msra.mxu0 %v467
    %589 = vmatpush.msra.mxu0 %v466
    %590 = vmatpush.msra.mxu0 %v465
    %591 = vmatpush.msra.mxu0 %v464
    %592 = vmatpush.msra.mxu0 %v463
    %593 = vmatpush.msra.mxu0 %v462
    %594 = vmatpush.msra.mxu0 %v461
    %595 = vmatpush.msra.mxu0 %v460
    %596 = vmatpush.msra.mxu0 %v459
    %597 = vmatmul.f32.gmra.mxu0 %v384
    %v598 = vpop.f32.mrf.mxu0
    %v599 = vadd.f32 %v564, %v598
    %600 = vmatmul.f32.gmra.mxu0 %v385
    %v601 = vpop.f32.mrf.mxu0
    %v602 = vadd.f32 %v567, %v601
    %603 = vmatmul.f32.gmra.mxu0 %v386
    %v604 = vpop.f32.mrf.mxu0
    %v605 = vadd.f32 %v570, %v604
    %606 = vmatmul.f32.gmra.mxu0 %v387
    %v607 = vpop.f32.mrf.mxu0
    %v608 = vadd.f32 %v573, %v607
    %609 = vmatmul.f32.gmra.mxu0 %v388
    %v610 = vpop.f32.mrf.mxu0
    %v611 = vadd.f32 %v576, %v610
    %612 = vmatmul.f32.gmra.mxu0 %v389
    %v613 = vpop.f32.mrf.mxu0
    %v614 = vadd.f32 %v579, %v613
    %615 = vdwg.mxu0
    %616 = vmatpush.msra.mxu0 %v490
    %617 = vmatpush.msra.mxu0 %v489
    %618 = vmatpush.msra.mxu0 %v488
    %619 = vmatpush.msra.mxu0 %v487
    %620 = vmatpush.msra.mxu0 %v486
    %621 = vmatpush.msra.mxu0 %v485
    %622 = vmatpush.msra.mxu0 %v484
    %623 = vmatpush.msra.mxu0 %v483
    %624 = vmatpush.msra.mxu0 %v482
    %625 = vmatpush.msra.mxu0 %v481
    %626 = vmatpush.msra.mxu0 %v480
    %627 = vmatpush.msra.mxu0 %v479
    %628 = vmatpush.msra.mxu0 %v478
    %629 = vmatpush.msra.mxu0 %v477
    %630 = vmatpush.msra.mxu0 %v476
    %631 = vmatpush.msra.mxu0 %v475
    %632 = vmatmul.f32.gmra.mxu0 %v421
    %v633 = vpop.f32.mrf.mxu0
    %v634 = vadd.f32 %v599, %v633
    %635 = vmatmul.f32.gmra.mxu0 %v422
    %v636 = vpop.f32.mrf.mxu0
    %v637 = vadd.f32 %v602, %v636
    %638 = vmatmul.f32.gmra.mxu0 %v423
    %v639 = vpop.f32.mrf.mxu0
    %v640 = vadd.f32 %v605, %v639
    %641 = vmatmul.f32.gmra.mxu0 %v424
    %v642 = vpop.f32.mrf.mxu0
    %v643 = vadd.f32 %v608, %v642
    %644 = vmatmul.f32.gmra.mxu0 %v425
    %v645 = vpop.f32.mrf.mxu0
    %v646 = vadd.f32 %v611, %v645
    %647 = vmatmul.f32.gmra.mxu0 %v426
    %v648 = vpop.f32.mrf.mxu0
    %v649 = vadd.f32 %v614, %v648
    %650 = vdwg.mxu0
    %651 = vmatpush.msra.mxu0 %v506
    %652 = vmatpush.msra.mxu0 %v505
    %653 = vmatpush.msra.mxu0 %v504
    %654 = vmatpush.msra.mxu0 %v503
    %655 = vmatpush.msra.mxu0 %v502
    %656 = vmatpush.msra.mxu0 %v501
    %657 = vmatpush.msra.mxu0 %v500
    %658 = vmatpush.msra.mxu0 %v499
    %659 = vmatpush.msra.mxu0 %v498
    %660 = vmatpush.msra.mxu0 %v497
    %661 = vmatpush.msra.mxu0 %v496
    %662 = vmatpush.msra.mxu0 %v495
    %663 = vmatpush.msra.mxu0 %v494
    %664 = vmatpush.msra.mxu0 %v493
    %665 = vmatpush.msra.mxu0 %v492
    %666 = vmatpush.msra.mxu0 %v491
    %667 = vmatmul.f32.gmra.mxu0 %v62
    %v668 = vpop.f32.mrf.mxu0
    %v669 = vadd.f32 %v634, %v668
    %670 = vmatmul.f32.gmra.mxu0 %v63
    %v671 = vpop.f32.mrf.mxu0
    %v672 = vadd.f32 %v637, %v671
    %673 = vmatmul.f32.gmra.mxu0 %v64
    %v674 = vpop.f32.mrf.mxu0
    %v675 = vadd.f32 %v640, %v674
    %676 = vmatmul.f32.gmra.mxu0 %v65
    %v677 = vpop.f32.mrf.mxu0
    %v678 = vadd.f32 %v643, %v677
    %679 = vmatmul.f32.gmra.mxu0 %v66
    %v680 = vpop.f32.mrf.mxu0
    %v681 = vadd.f32 %v646, %v680
    %682 = vmatmul.f32.gmra.mxu0 %v67
    %v683 = vpop.f32.mrf.mxu0
    %v684 = vadd.f32 %v649, %v683
    %685 = vdwg.mxu0
    %v686 = vmax.f32 %v669, 0.0
    %v687 = vmax.f32 %v672, 0.0
    %v688 = vmax.f32 %v675, 0.0
    %v689 = vmax.f32 %v678, 0.0
    %v690 = vmax.f32 %v681, 0.0
    %v691 = vmax.f32 %v684, 0.0
    %v692 = vrot.slane %v686, 4
    %v693 = vrot.slane %v687, 4
    %v694 = vrot.slane %v688, 4
    %v695 = vrot.slane %v689, 4
    %v696 = vrot.slane %v690, 4
    %v697 = vrot.slane %v691, 4
    %v698 = vsel %vm285, %v696, %v697
    %v699 = vsel %vm285, %v695, %v696
    %v700 = vsel %vm285, %v694, %v695
    %v701 = vsel %vm285, %v693, %v694
    %v702 = vsel %vm285, %v692, %v693
    %v703 = vsel %vm285, %v697, %v692
    %v704 = vsel %vm304, 0.0, %v703
    %v705 = vsel %vm305, 0.0, %v702
    %v706 = vsel %vm306, 0.0, %v701
    %v707 = vsel %vm307, 0.0, %v700
    %v708 = vsel %vm308, 0.0, %v699
    %v709 = vsel %vm309, 0.0, %v698
    %v710 = vrot.slane %v686, 5
    %v711 = vrot.slane %v687, 5
    %v712 = vrot.slane %v688, 5
    %v713 = vrot.slane %v689, 5
    %v714 = vrot.slane %v690, 5
    %v715 = vrot.slane %v691, 5
    %v716 = vsel %vm322, %v714, %v715
    %v717 = vsel %vm322, %v713, %v714
    %v718 = vsel %vm322, %v712, %v713
    %v719 = vsel %vm322, %v711, %v712
    %v720 = vsel %vm322, %v710, %v711
    %v721 = vsel %vm322, %v715, %v710
    %v722 = vsel %vm341, 0.0, %v721
    %v723 = vsel %vm342, 0.0, %v720
    %v724 = vsel %vm343, 0.0, %v719
    %v725 = vsel %vm344, 0.0, %v718
    %v726 = vsel %vm345, 0.0, %v717
    %v727 = vsel %vm346, 0.0, %v716
    %v728 = vrot.slane %v686, 6
    %v729 = vrot.slane %v687, 6
    %v730 = vrot.slane %v688, 6
    %v731 = vrot.slane %v689, 6
    %v732 = vrot.slane %v690, 6
    %v733 = vrot.slane %v691, 6
    %v734 = vsel %vm359, %v732, %v733
    %v735 = vsel %vm359, %v731, %v732
    %v736 = vsel %vm359, %v730, %v731
    %v737 = vsel %vm359, %v729, %v730
    %v738 = vsel %vm359, %v728, %v729
    %v739 = vsel %vm359, %v733, %v728
    %v740 = vsel %vm378, 0.0, %v739
    %v741 = vsel %vm379, 0.0, %v738
    %v742 = vsel %vm380, 0.0, %v737
    %v743 = vsel %vm381, 0.0, %v736
    %v744 = vsel %vm382, 0.0, %v735
    %v745 = vsel %vm383, 0.0, %v734
    %v746 = vrot.slane %v686, 7
    %v747 = vrot.slane %v687, 7
    %v748 = vrot.slane %v688, 7
    %v749 = vrot.slane %v689, 7
    %v750 = vrot.slane %v690, 7
    %v751 = vrot.slane %v691, 7
    %v752 = vsel %vm396, %v750, %v751
    %v753 = vsel %vm396, %v749, %v750
    %v754 = vsel %vm396, %v748, %v749
    %v755 = vsel %vm396, %v747, %v748
    %v756 = vsel %vm396, %v746, %v747
    %v757 = vsel %vm396, %v751, %v746
    %v758 = vsel %vm415, 0.0, %v757
    %v759 = vsel %vm416, 0.0, %v756
    %v760 = vsel %vm417, 0.0, %v755
    %v761 = vsel %vm418, 0.0, %v754
    %v762 = vsel %vm419, 0.0, %v753
    %v763 = vsel %vm420, 0.0, %v752
    %s764 = scalar_lea.vmem [#allocation6], 640
    %v765 = vld [vmem:[%s764] sm:$0xff]
    %v766 = vld [vmem:[%s764 + $0x8] sm:$0xff]
    %v767 = vld [vmem:[%s764 + $0x10] sm:$0xff]
    %v768 = vld [vmem:[%s764 + $0x18] sm:$0xff]
    %v769 = vld [vmem:[%s764 + $0x20] sm:$0xff]
    %v770 = vld [vmem:[%s764 + $0x28] sm:$0xff]
    %v771 = vld [vmem:[%s764 + $0x30] sm:$0xff]
    %v772 = vld [vmem:[%s764 + $0x38] sm:$0xff]
    %v773 = vld [vmem:[%s764 + $0x40] sm:$0xff]
    %v774 = vld [vmem:[%s764 + $0x48] sm:$0xff]
    %v775 = vld [vmem:[%s764 + $0x50] sm:$0xff]
    %v776 = vld [vmem:[%s764 + $0x58] sm:$0xff]
    %v777 = vld [vmem:[%s764 + $0x60] sm:$0xff]
    %v778 = vld [vmem:[%s764 + $0x68] sm:$0xff]
    %v779 = vld [vmem:[%s764 + $0x70] sm:$0xff]
    %v780 = vld [vmem:[%s764 + $0x78] sm:$0xff]
    %v781 = vld [vmem:[%s764 + $0x80] sm:$0xff]
    %v782 = vld [vmem:[%s764 + $0x88] sm:$0xff]
    %v783 = vld [vmem:[%s764 + $0x90] sm:$0xff]
    %v784 = vld [vmem:[%s764 + $0x98] sm:$0xff]
    %v785 = vld [vmem:[%s764 + $0xa0] sm:$0xff]
    %v786 = vld [vmem:[%s764 + $0xa8] sm:$0xff]
    %v787 = vld [vmem:[%s764 + $0xb0] sm:$0xff]
    %v788 = vld [vmem:[%s764 + $0xb8] sm:$0xff]
    %v789 = vld [vmem:[%s764 + $0xc0] sm:$0xff]
    %v790 = vld [vmem:[%s764 + $0xc8] sm:$0xff]
    %v791 = vld [vmem:[%s764 + $0xd0] sm:$0xff]
    %v792 = vld [vmem:[%s764 + $0xd8] sm:$0xff]
    %v793 = vld [vmem:[%s764 + $0xe0] sm:$0xff]
    %v794 = vld [vmem:[%s764 + $0xe8] sm:$0xff]
    %v795 = vld [vmem:[%s764 + $0xf0] sm:$0xff]
    %v796 = vld [vmem:[%s764 + $0xf8] sm:$0xff]
    %v797 = vld [vmem:[%s764 + $0x100] sm:$0xff]
    %v798 = vld [vmem:[%s764 + $0x108] sm:$0xff]
    %v799 = vld [vmem:[%s764 + $0x110] sm:$0xff]
    %v800 = vld [vmem:[%s764 + $0x118] sm:$0xff]
    %v801 = vld [vmem:[%s764 + $0x120] sm:$0xff]
    %v802 = vld [vmem:[%s764 + $0x128] sm:$0xff]
    %v803 = vld [vmem:[%s764 + $0x130] sm:$0xff]
    %v804 = vld [vmem:[%s764 + $0x138] sm:$0xff]
    %v805 = vld [vmem:[%s764 + $0x140] sm:$0xff]
    %v806 = vld [vmem:[%s764 + $0x148] sm:$0xff]
    %v807 = vld [vmem:[%s764 + $0x150] sm:$0xff]
    %v808 = vld [vmem:[%s764 + $0x158] sm:$0xff]
    %v809 = vld [vmem:[%s764 + $0x160] sm:$0xff]
    %v810 = vld [vmem:[%s764 + $0x168] sm:$0xff]
    %v811 = vld [vmem:[%s764 + $0x170] sm:$0xff]
    %v812 = vld [vmem:[%s764 + $0x178] sm:$0xff]
    %v813 = vld [vmem:[%s764 + $0x180] sm:$0xff]
    %v814 = vld [vmem:[%s764 + $0x188] sm:$0xff]
    %v815 = vld [vmem:[%s764 + $0x190] sm:$0xff]
    %v816 = vld [vmem:[%s764 + $0x198] sm:$0xff]
    %v817 = vld [vmem:[%s764 + $0x1a0] sm:$0xff]
    %v818 = vld [vmem:[%s764 + $0x1a8] sm:$0xff]
    %v819 = vld [vmem:[%s764 + $0x1b0] sm:$0xff]
    %v820 = vld [vmem:[%s764 + $0x1b8] sm:$0xff]
    %v821 = vld [vmem:[%s764 + $0x1c0] sm:$0xff]
    %v822 = vld [vmem:[%s764 + $0x1c8] sm:$0xff]
    %v823 = vld [vmem:[%s764 + $0x1d0] sm:$0xff]
    %v824 = vld [vmem:[%s764 + $0x1d8] sm:$0xff]
    %v825 = vld [vmem:[%s764 + $0x1e0] sm:$0xff]
    %v826 = vld [vmem:[%s764 + $0x1e8] sm:$0xff]
    %v827 = vld [vmem:[%s764 + $0x1f0] sm:$0xff]
    %v828 = vld [vmem:[%s764 + $0x1f8] sm:$0xff]
    %v829 = vld [vmem:[%s764 + $0x200] sm:$0xff]
    %v830 = vld [vmem:[%s764 + $0x208] sm:$0xff]
    %v831 = vld [vmem:[%s764 + $0x210] sm:$0xff]
    %v832 = vld [vmem:[%s764 + $0x218] sm:$0xff]
    %v833 = vld [vmem:[%s764 + $0x220] sm:$0xff]
    %v834 = vld [vmem:[%s764 + $0x228] sm:$0xff]
    %v835 = vld [vmem:[%s764 + $0x230] sm:$0xff]
    %v836 = vld [vmem:[%s764 + $0x238] sm:$0xff]
    %v837 = vld [vmem:[%s764 + $0x240] sm:$0xff]
    %v838 = vld [vmem:[%s764 + $0x248] sm:$0xff]
    %v839 = vld [vmem:[%s764 + $0x250] sm:$0xff]
    %v840 = vld [vmem:[%s764 + $0x258] sm:$0xff]
    %v841 = vld [vmem:[%s764 + $0x260] sm:$0xff]
    %v842 = vld [vmem:[%s764 + $0x268] sm:$0xff]
    %v843 = vld [vmem:[%s764 + $0x270] sm:$0xff]
    %v844 = vld [vmem:[%s764 + $0x278] sm:$0xff]
    %s845 = scalar_lea.vmem [#allocation8], 1
    %v846 = vld [vmem:[%s845] sm:$0x1]
    %v848 = vperm.slane %v846, 0
    %850 = vmatpush.msra.mxu0 %v780
    %851 = vmatpush.msra.mxu0 %v779
    %852 = vmatpush.msra.mxu0 %v778
    %853 = vmatpush.msra.mxu0 %v777
    %854 = vmatpush.msra.mxu0 %v776
    %855 = vmatpush.msra.mxu0 %v775
    %856 = vmatpush.msra.mxu0 %v774
    %857 = vmatpush.msra.mxu0 %v773
    %858 = vmatpush.msra.mxu0 %v772
    %859 = vmatpush.msra.mxu0 %v771
    %860 = vmatpush.msra.mxu0 %v770
    %861 = vmatpush.msra.mxu0 %v769
    %862 = vmatpush.msra.mxu0 %v768
    %863 = vmatpush.msra.mxu0 %v767
    %864 = vmatpush.msra.mxu0 %v766
    %865 = vmatpush.msra.mxu0 %v765
    %866 = vmatmul.f32.gmra.mxu0 %v704
    %v867 = vpop.f32.mrf.mxu0
    %v868 = vadd.f32 %v848, %v867
    %869 = vmatmul.f32.gmra.mxu0 %v705
    %v870 = vpop.f32.mrf.mxu0
    %v871 = vadd.f32 %v848, %v870
    %872 = vmatmul.f32.gmra.mxu0 %v706
    %v873 = vpop.f32.mrf.mxu0
    %v874 = vadd.f32 %v848, %v873
    %875 = vmatmul.f32.gmra.mxu0 %v707
    %v876 = vpop.f32.mrf.mxu0
    %v877 = vadd.f32 %v848, %v876
    %878 = vmatmul.f32.gmra.mxu0 %v708
    %v879 = vpop.f32.mrf.mxu0
    %v880 = vadd.f32 %v848, %v879
    %881 = vmatmul.f32.gmra.mxu0 %v709
    %v882 = vpop.f32.mrf.mxu0
    %v883 = vadd.f32 %v848, %v882
    %884 = vdwg.mxu0
    %885 = vmatpush.msra.mxu0 %v796
    %886 = vmatpush.msra.mxu0 %v795
    %887 = vmatpush.msra.mxu0 %v794
    %888 = vmatpush.msra.mxu0 %v793
    %889 = vmatpush.msra.mxu0 %v792
    %890 = vmatpush.msra.mxu0 %v791
    %891 = vmatpush.msra.mxu0 %v790
    %892 = vmatpush.msra.mxu0 %v789
    %893 = vmatpush.msra.mxu0 %v788
    %894 = vmatpush.msra.mxu0 %v787
    %895 = vmatpush.msra.mxu0 %v786
    %896 = vmatpush.msra.mxu0 %v785
    %897 = vmatpush.msra.mxu0 %v784
    %898 = vmatpush.msra.mxu0 %v783
    %899 = vmatpush.msra.mxu0 %v782
    %900 = vmatpush.msra.mxu0 %v781
    %901 = vmatmul.f32.gmra.mxu0 %v722
    %v902 = vpop.f32.mrf.mxu0
    %v903 = vadd.f32 %v868, %v902
    %904 = vmatmul.f32.gmra.mxu0 %v723
    %v905 = vpop.f32.mrf.mxu0
    %v906 = vadd.f32 %v871, %v905
    %907 = vmatmul.f32.gmra.mxu0 %v724
    %v908 = vpop.f32.mrf.mxu0
    %v909 = vadd.f32 %v874, %v908
    %910 = vmatmul.f32.gmra.mxu0 %v725
    %v911 = vpop.f32.mrf.mxu0
    %v912 = vadd.f32 %v877, %v911
    %913 = vmatmul.f32.gmra.mxu0 %v726
    %v914 = vpop.f32.mrf.mxu0
    %v915 = vadd.f32 %v880, %v914
    %916 = vmatmul.f32.gmra.mxu0 %v727
    %v917 = vpop.f32.mrf.mxu0
    %v918 = vadd.f32 %v883, %v917
    %919 = vdwg.mxu0
    %920 = vmatpush.msra.mxu0 %v812
    %921 = vmatpush.msra.mxu0 %v811
    %922 = vmatpush.msra.mxu0 %v810
    %923 = vmatpush.msra.mxu0 %v809
    %924 = vmatpush.msra.mxu0 %v808
    %925 = vmatpush.msra.mxu0 %v807
    %926 = vmatpush.msra.mxu0 %v806
    %927 = vmatpush.msra.mxu0 %v805
    %928 = vmatpush.msra.mxu0 %v804
    %929 = vmatpush.msra.mxu0 %v803
    %930 = vmatpush.msra.mxu0 %v802
    %931 = vmatpush.msra.mxu0 %v801
    %932 = vmatpush.msra.mxu0 %v800
    %933 = vmatpush.msra.mxu0 %v799
    %934 = vmatpush.msra.mxu0 %v798
    %935 = vmatpush.msra.mxu0 %v797
    %936 = vmatmul.f32.gmra.mxu0 %v740
    %v937 = vpop.f32.mrf.mxu0
    %v938 = vadd.f32 %v903, %v937
    %939 = vmatmul.f32.gmra.mxu0 %v741
    %v940 = vpop.f32.mrf.mxu0
    %v941 = vadd.f32 %v906, %v940
    %942 = vmatmul.f32.gmra.mxu0 %v742
    %v943 = vpop.f32.mrf.mxu0
    %v944 = vadd.f32 %v909, %v943
    %945 = vmatmul.f32.gmra.mxu0 %v743
    %v946 = vpop.f32.mrf.mxu0
    %v947 = vadd.f32 %v912, %v946
    %948 = vmatmul.f32.gmra.mxu0 %v744
    %v949 = vpop.f32.mrf.mxu0
    %v950 = vadd.f32 %v915, %v949
    %951 = vmatmul.f32.gmra.mxu0 %v745
    %v952 = vpop.f32.mrf.mxu0
    %v953 = vadd.f32 %v918, %v952
    %954 = vdwg.mxu0
    %955 = vmatpush.msra.mxu0 %v828
    %956 = vmatpush.msra.mxu0 %v827
    %957 = vmatpush.msra.mxu0 %v826
    %958 = vmatpush.msra.mxu0 %v825
    %959 = vmatpush.msra.mxu0 %v824
    %960 = vmatpush.msra.mxu0 %v823
    %961 = vmatpush.msra.mxu0 %v822
    %962 = vmatpush.msra.mxu0 %v821
    %963 = vmatpush.msra.mxu0 %v820
    %964 = vmatpush.msra.mxu0 %v819
    %965 = vmatpush.msra.mxu0 %v818
    %966 = vmatpush.msra.mxu0 %v817
    %967 = vmatpush.msra.mxu0 %v816
    %968 = vmatpush.msra.mxu0 %v815
    %969 = vmatpush.msra.mxu0 %v814
    %970 = vmatpush.msra.mxu0 %v813
    %971 = vmatmul.f32.gmra.mxu0 %v758
    %v972 = vpop.f32.mrf.mxu0
    %v973 = vadd.f32 %v938, %v972
    %974 = vmatmul.f32.gmra.mxu0 %v759
    %v975 = vpop.f32.mrf.mxu0
    %v976 = vadd.f32 %v941, %v975
    %977 = vmatmul.f32.gmra.mxu0 %v760
    %v978 = vpop.f32.mrf.mxu0
    %v979 = vadd.f32 %v944, %v978
    %980 = vmatmul.f32.gmra.mxu0 %v761
    %v981 = vpop.f32.mrf.mxu0
    %v982 = vadd.f32 %v947, %v981
    %983 = vmatmul.f32.gmra.mxu0 %v762
    %v984 = vpop.f32.mrf.mxu0
    %v985 = vadd.f32 %v950, %v984
    %986 = vmatmul.f32.gmra.mxu0 %v763
    %v987 = vpop.f32.mrf.mxu0
    %v988 = vadd.f32 %v953, %v987
    %989 = vdwg.mxu0
    %990 = vmatpush.msra.mxu0 %v844
    %991 = vmatpush.msra.mxu0 %v843
    %992 = vmatpush.msra.mxu0 %v842
    %993 = vmatpush.msra.mxu0 %v841
    %994 = vmatpush.msra.mxu0 %v840
    %995 = vmatpush.msra.mxu0 %v839
    %996 = vmatpush.msra.mxu0 %v838
    %997 = vmatpush.msra.mxu0 %v837
    %998 = vmatpush.msra.mxu0 %v836
    %999 = vmatpush.msra.mxu0 %v835
    %1000 = vmatpush.msra.mxu0 %v834
    %1001 = vmatpush.msra.mxu0 %v833
    %1002 = vmatpush.msra.mxu0 %v832
    %1003 = vmatpush.msra.mxu0 %v831
    %1004 = vmatpush.msra.mxu0 %v830
    %1005 = vmatpush.msra.mxu0 %v829
    %1006 = vmatmul.f32.gmra.mxu0 %v686
    %v1007 = vpop.f32.mrf.mxu0
    %v1008 = vadd.f32 %v973, %v1007
    %1009 = vmatmul.f32.gmra.mxu0 %v687
    %v1010 = vpop.f32.mrf.mxu0
    %v1011 = vadd.f32 %v976, %v1010
    %1012 = vmatmul.f32.gmra.mxu0 %v688
    %v1013 = vpop.f32.mrf.mxu0
    %v1014 = vadd.f32 %v979, %v1013
    %1015 = vmatmul.f32.gmra.mxu0 %v689
    %v1016 = vpop.f32.mrf.mxu0
    %v1017 = vadd.f32 %v982, %v1016
    %1018 = vmatmul.f32.gmra.mxu0 %v690
    %v1019 = vpop.f32.mrf.mxu0
    %v1020 = vadd.f32 %v985, %v1019
    %1021 = vmatmul.f32.gmra.mxu0 %v691
    %v1022 = vpop.f32.mrf.mxu0
    %v1023 = vadd.f32 %v988, %v1022
    %1024 = vdwg.mxu0
    %v1025 = vmax.f32 %v1008, 0.0
    %v1026 = vmax.f32 %v1011, 0.0
    %v1027 = vmax.f32 %v1014, 0.0
    %v1028 = vmax.f32 %v1017, 0.0
    %v1029 = vmax.f32 %v1020, 0.0
    %v1030 = vmax.f32 %v1023, 0.0
    %1031 = vst [vmem:[#allocation2] sm:$0xff] %v1025
    %1032 = vst [vmem:[#allocation2 + $0x8] sm:$0xff] %v1026
    %1033 = vst [vmem:[#allocation2 + $0x10] sm:$0xff] %v1027
    %1034 = vst [vmem:[#allocation2 + $0x18] sm:$0xff] %v1028
    %1035 = vst [vmem:[#allocation2 + $0x20] sm:$0xff] %v1029
    %1036 = vst [vmem:[#allocation2 + $0x28] sm:$0xff] %v1030
    %v1037 = vld [vmem:[#allocation2] ss:$3 sm:$0xff]
    %s1038 = scalar_lea.vmem [#allocation2], 24
    %v1039 = vld [vmem:[%s1038] ss:$3 sm:$0xff]
    %s1040 = scalar_lea.vmem [#allocation2], 1
    %v1041 = vld [vmem:[%s1040] ss:$3 sm:$0xff]
    %s1042 = scalar_lea.vmem [#allocation2], 25
    %v1043 = vld [vmem:[%s1042] ss:$3 sm:$0xff]
    %v1044 = vmax.f32 %v1037, %v1041
    %v1045 = vmax.f32 %v1039, %v1043
    %s1046 = scalar_lea.vmem [#allocation2], 2
    %v1047 = vld [vmem:[%s1046] ss:$3 sm:$0xff]
    %s1048 = scalar_lea.vmem [#allocation2], 26
    %v1049 = vld [vmem:[%s1048] ss:$3 sm:$0xff]
    %v1050 = vmax.f32 %v1044, %v1047
    %v1051 = vmax.f32 %v1045, %v1049
    %vm1052 = vcmp.lt.s32.totalorder %v69, 0
    %v1053 = vsub.s32 0, %v69
    %v1054 = vsel %vm1052, %v1053, %v69
    %v1055 = vshrl.u32 %v1054, 3
    %v1056 = vand.u32 %v1054, 7
    %v1057 = vsub.s32 0, %v1056
    %v1058 = vsel %vm1052, %v1057, %v1056
    %vm1059 = vcmp.lt.s32.totalorder %v70, 0
    %v1060 = vsub.s32 0, %v70
    %v1061 = vsel %vm1059, %v1060, %v70
    %v1062 = vshrl.u32 %v1061, 3
    %v1063 = vand.u32 %v1061, 7
    %v1064 = vsub.s32 0, %v1063
    %v1065 = vsel %vm1059, %v1064, %v1063
    %vm1066 = vcmp.ne.s32.totalorder %v1058, 0
    %vm1067 = vcmp.ne.s32.totalorder %v1065, 0
    %vm1068 = vcmp.lt.s32.totalorder %v1058, 0
    %vm1069 = vcmp.lt.s32.totalorder %v1065, 0
    %vm1070 = vmand %vm1068, %vm1066
    %vm1071 = vmand %vm1069, %vm1067
    %v1072 = vadd.s32 %v1058, 8
    %v1073 = vadd.s32 %v1065, 8
    %v1074 = vsel %vm1070, %v1072, %v1058
    %v1075 = vsel %vm1071, %v1073, %v1065
    %v1076 = vrot.slane %v1050, 4
    %v1077 = vrot.slane %v1051, 4
    %v1078 = vsel %vm285, %v1076, %v1077
    %v1079 = vsel %vm285, %v1077, %v1076
    %vm1080 = vcmp.lt.s32.totalorder %v1074, 4
    %vm1081 = vcmp.lt.s32.totalorder %v1075, 4
    %v1082 = vsel %vm1080, 1, 0
    %v1083 = vsel %vm1081, 1, 0
    %vm1084 = vcmp.eq.s32.totalorder %v1082, 1
    %vm1085 = vcmp.eq.s32.totalorder %v1083, 1
    %v1086 = vsel %vm1084, 0.0, %v1079
    %v1087 = vsel %vm1085, 0.0, %v1078
    %v1088 = vrot.slane %v1050, 5
    %v1089 = vrot.slane %v1051, 5
    %v1090 = vsel %vm322, %v1088, %v1089
    %v1091 = vsel %vm322, %v1089, %v1088
    %vm1092 = vcmp.lt.s32.totalorder %v1074, 3
    %vm1093 = vcmp.lt.s32.totalorder %v1075, 3
    %v1094 = vsel %vm1092, 1, 0
    %v1095 = vsel %vm1093, 1, 0
    %vm1096 = vcmp.eq.s32.totalorder %v1094, 1
    %vm1097 = vcmp.eq.s32.totalorder %v1095, 1
    %v1098 = vsel %vm1096, 0.0, %v1091
    %v1099 = vsel %vm1097, 0.0, %v1090
    %v1100 = vrot.slane %v1050, 6
    %v1101 = vrot.slane %v1051, 6
    %v1102 = vsel %vm359, %v1100, %v1101
    %v1103 = vsel %vm359, %v1101, %v1100
    %vm1104 = vcmp.lt.s32.totalorder %v1074, 2
    %vm1105 = vcmp.lt.s32.totalorder %v1075, 2
    %v1106 = vsel %vm1104, 1, 0
    %v1107 = vsel %vm1105, 1, 0
    %vm1108 = vcmp.eq.s32.totalorder %v1106, 1
    %vm1109 = vcmp.eq.s32.totalorder %v1107, 1
    %v1110 = vsel %vm1108, 0.0, %v1103
    %v1111 = vsel %vm1109, 0.0, %v1102
    %v1112 = vrot.slane %v1050, 7
    %v1113 = vrot.slane %v1051, 7
    %v1114 = vsel %vm396, %v1112, %v1113
    %v1115 = vsel %vm396, %v1113, %v1112
    %vm1116 = vcmp.lt.s32.totalorder %v1074, 1
    %vm1117 = vcmp.lt.s32.totalorder %v1075, 1
    %v1118 = vsel %vm1116, 1, 0
    %v1119 = vsel %vm1117, 1, 0
    %vm1120 = vcmp.eq.s32.totalorder %v1118, 1
    %vm1121 = vcmp.eq.s32.totalorder %v1119, 1
    %v1122 = vsel %vm1120, 0.0, %v1115
    %v1123 = vsel %vm1121, 0.0, %v1114
    %s1124 = scalar_lea.vmem [#allocation6], 1280
    %v1125 = vld [vmem:[%s1124] sm:$0xff]
    %v1126 = vld [vmem:[%s1124 + $0x8] sm:$0xff]
    %v1127 = vld [vmem:[%s1124 + $0x10] sm:$0xff]
    %v1128 = vld [vmem:[%s1124 + $0x18] sm:$0xff]
    %v1129 = vld [vmem:[%s1124 + $0x20] sm:$0xff]
    %v1130 = vld [vmem:[%s1124 + $0x28] sm:$0xff]
    %v1131 = vld [vmem:[%s1124 + $0x30] sm:$0xff]
    %v1132 = vld [vmem:[%s1124 + $0x38] sm:$0xff]
    %v1133 = vld [vmem:[%s1124 + $0x40] sm:$0xff]
    %v1134 = vld [vmem:[%s1124 + $0x48] sm:$0xff]
    %v1135 = vld [vmem:[%s1124 + $0x50] sm:$0xff]
    %v1136 = vld [vmem:[%s1124 + $0x58] sm:$0xff]
    %v1137 = vld [vmem:[%s1124 + $0x60] sm:$0xff]
    %v1138 = vld [vmem:[%s1124 + $0x68] sm:$0xff]
    %v1139 = vld [vmem:[%s1124 + $0x70] sm:$0xff]
    %v1140 = vld [vmem:[%s1124 + $0x78] sm:$0xff]
    %v1141 = vld [vmem:[%s1124 + $0x80] sm:$0xff]
    %v1142 = vld [vmem:[%s1124 + $0x88] sm:$0xff]
    %v1143 = vld [vmem:[%s1124 + $0x90] sm:$0xff]
    %v1144 = vld [vmem:[%s1124 + $0x98] sm:$0xff]
    %v1145 = vld [vmem:[%s1124 + $0xa0] sm:$0xff]
    %v1146 = vld [vmem:[%s1124 + $0xa8] sm:$0xff]
    %v1147 = vld [vmem:[%s1124 + $0xb0] sm:$0xff]
    %v1148 = vld [vmem:[%s1124 + $0xb8] sm:$0xff]
    %v1149 = vld [vmem:[%s1124 + $0xc0] sm:$0xff]
    %v1150 = vld [vmem:[%s1124 + $0xc8] sm:$0xff]
    %v1151 = vld [vmem:[%s1124 + $0xd0] sm:$0xff]
    %v1152 = vld [vmem:[%s1124 + $0xd8] sm:$0xff]
    %v1153 = vld [vmem:[%s1124 + $0xe0] sm:$0xff]
    %v1154 = vld [vmem:[%s1124 + $0xe8] sm:$0xff]
    %v1155 = vld [vmem:[%s1124 + $0xf0] sm:$0xff]
    %v1156 = vld [vmem:[%s1124 + $0xf8] sm:$0xff]
    %v1157 = vld [vmem:[%s1124 + $0x100] sm:$0xff]
    %v1158 = vld [vmem:[%s1124 + $0x108] sm:$0xff]
    %v1159 = vld [vmem:[%s1124 + $0x110] sm:$0xff]
    %v1160 = vld [vmem:[%s1124 + $0x118] sm:$0xff]
    %v1161 = vld [vmem:[%s1124 + $0x120] sm:$0xff]
    %v1162 = vld [vmem:[%s1124 + $0x128] sm:$0xff]
    %v1163 = vld [vmem:[%s1124 + $0x130] sm:$0xff]
    %v1164 = vld [vmem:[%s1124 + $0x138] sm:$0xff]
    %v1165 = vld [vmem:[%s1124 + $0x140] sm:$0xff]
    %v1166 = vld [vmem:[%s1124 + $0x148] sm:$0xff]
    %v1167 = vld [vmem:[%s1124 + $0x150] sm:$0xff]
    %v1168 = vld [vmem:[%s1124 + $0x158] sm:$0xff]
    %v1169 = vld [vmem:[%s1124 + $0x160] sm:$0xff]
    %v1170 = vld [vmem:[%s1124 + $0x168] sm:$0xff]
    %v1171 = vld [vmem:[%s1124 + $0x170] sm:$0xff]
    %v1172 = vld [vmem:[%s1124 + $0x178] sm:$0xff]
    %v1173 = vld [vmem:[%s1124 + $0x180] sm:$0xff]
    %v1174 = vld [vmem:[%s1124 + $0x188] sm:$0xff]
    %v1175 = vld [vmem:[%s1124 + $0x190] sm:$0xff]
    %v1176 = vld [vmem:[%s1124 + $0x198] sm:$0xff]
    %v1177 = vld [vmem:[%s1124 + $0x1a0] sm:$0xff]
    %v1178 = vld [vmem:[%s1124 + $0x1a8] sm:$0xff]
    %v1179 = vld [vmem:[%s1124 + $0x1b0] sm:$0xff]
    %v1180 = vld [vmem:[%s1124 + $0x1b8] sm:$0xff]
    %v1181 = vld [vmem:[%s1124 + $0x1c0] sm:$0xff]
    %v1182 = vld [vmem:[%s1124 + $0x1c8] sm:$0xff]
    %v1183 = vld [vmem:[%s1124 + $0x1d0] sm:$0xff]
    %v1184 = vld [vmem:[%s1124 + $0x1d8] sm:$0xff]
    %v1185 = vld [vmem:[%s1124 + $0x1e0] sm:$0xff]
    %v1186 = vld [vmem:[%s1124 + $0x1e8] sm:$0xff]
    %v1187 = vld [vmem:[%s1124 + $0x1f0] sm:$0xff]
    %v1188 = vld [vmem:[%s1124 + $0x1f8] sm:$0xff]
    %v1189 = vld [vmem:[%s1124 + $0x200] sm:$0xff]
    %v1190 = vld [vmem:[%s1124 + $0x208] sm:$0xff]
    %v1191 = vld [vmem:[%s1124 + $0x210] sm:$0xff]
    %v1192 = vld [vmem:[%s1124 + $0x218] sm:$0xff]
    %v1193 = vld [vmem:[%s1124 + $0x220] sm:$0xff]
    %v1194 = vld [vmem:[%s1124 + $0x228] sm:$0xff]
    %v1195 = vld [vmem:[%s1124 + $0x230] sm:$0xff]
    %v1196 = vld [vmem:[%s1124 + $0x238] sm:$0xff]
    %v1197 = vld [vmem:[%s1124 + $0x240] sm:$0xff]
    %v1198 = vld [vmem:[%s1124 + $0x248] sm:$0xff]
    %v1199 = vld [vmem:[%s1124 + $0x250] sm:$0xff]
    %v1200 = vld [vmem:[%s1124 + $0x258] sm:$0xff]
    %v1201 = vld [vmem:[%s1124 + $0x260] sm:$0xff]
    %v1202 = vld [vmem:[%s1124 + $0x268] sm:$0xff]
    %v1203 = vld [vmem:[%s1124 + $0x270] sm:$0xff]
    %v1204 = vld [vmem:[%s1124 + $0x278] sm:$0xff]
    %s1205 = scalar_lea.vmem [#allocation8], 2
    %v1206 = vld [vmem:[%s1205] sm:$0x1]
    %v1208 = vperm.slane %v1206, 0
    %1210 = vmatpush.msra.mxu0 %v1140
    %1211 = vmatpush.msra.mxu0 %v1139
    %1212 = vmatpush.msra.mxu0 %v1138
    %1213 = vmatpush.msra.mxu0 %v1137
    %1214 = vmatpush.msra.mxu0 %v1136
    %1215 = vmatpush.msra.mxu0 %v1135
    %1216 = vmatpush.msra.mxu0 %v1134
    %1217 = vmatpush.msra.mxu0 %v1133
    %1218 = vmatpush.msra.mxu0 %v1132
    %1219 = vmatpush.msra.mxu0 %v1131
    %1220 = vmatpush.msra.mxu0 %v1130
    %1221 = vmatpush.msra.mxu0 %v1129
    %1222 = vmatpush.msra.mxu0 %v1128
    %1223 = vmatpush.msra.mxu0 %v1127
    %1224 = vmatpush.msra.mxu0 %v1126
    %1225 = vmatpush.msra.mxu0 %v1125
    %1226 = vmatmul.f32.gmra.mxu0 %v1086
    %v1227 = vpop.f32.mrf.mxu0
    %v1228 = vadd.f32 %v1208, %v1227
    %1229 = vmatmul.f32.gmra.mxu0 %v1087
    %v1230 = vpop.f32.mrf.mxu0
    %v1231 = vadd.f32 %v1208, %v1230
    %1232 = vdwg.mxu0
    %1233 = vmatpush.msra.mxu0 %v1156
    %1234 = vmatpush.msra.mxu0 %v1155
    %1235 = vmatpush.msra.mxu0 %v1154
    %1236 = vmatpush.msra.mxu0 %v1153
    %1237 = vmatpush.msra.mxu0 %v1152
    %1238 = vmatpush.msra.mxu0 %v1151
    %1239 = vmatpush.msra.mxu0 %v1150
    %1240 = vmatpush.msra.mxu0 %v1149
    %1241 = vmatpush.msra.mxu0 %v1148
    %1242 = vmatpush.msra.mxu0 %v1147
    %1243 = vmatpush.msra.mxu0 %v1146
    %1244 = vmatpush.msra.mxu0 %v1145
    %1245 = vmatpush.msra.mxu0 %v1144
    %1246 = vmatpush.msra.mxu0 %v1143
    %1247 = vmatpush.msra.mxu0 %v1142
    %1248 = vmatpush.msra.mxu0 %v1141
    %1249 = vmatmul.f32.gmra.mxu0 %v1098
    %v1250 = vpop.f32.mrf.mxu0
    %v1251 = vadd.f32 %v1228, %v1250
    %1252 = vmatmul.f32.gmra.mxu0 %v1099
    %v1253 = vpop.f32.mrf.mxu0
    %v1254 = vadd.f32 %v1231, %v1253
    %1255 = vdwg.mxu0
    %1256 = vmatpush.msra.mxu0 %v1172
    %1257 = vmatpush.msra.mxu0 %v1171
    %1258 = vmatpush.msra.mxu0 %v1170
    %1259 = vmatpush.msra.mxu0 %v1169
    %1260 = vmatpush.msra.mxu0 %v1168
    %1261 = vmatpush.msra.mxu0 %v1167
    %1262 = vmatpush.msra.mxu0 %v1166
    %1263 = vmatpush.msra.mxu0 %v1165
    %1264 = vmatpush.msra.mxu0 %v1164
    %1265 = vmatpush.msra.mxu0 %v1163
    %1266 = vmatpush.msra.mxu0 %v1162
    %1267 = vmatpush.msra.mxu0 %v1161
    %1268 = vmatpush.msra.mxu0 %v1160
    %1269 = vmatpush.msra.mxu0 %v1159
    %1270 = vmatpush.msra.mxu0 %v1158
    %1271 = vmatpush.msra.mxu0 %v1157
    %1272 = vmatmul.f32.gmra.mxu0 %v1110
    %v1273 = vpop.f32.mrf.mxu0
    %v1274 = vadd.f32 %v1251, %v1273
    %1275 = vmatmul.f32.gmra.mxu0 %v1111
    %v1276 = vpop.f32.mrf.mxu0
    %v1277 = vadd.f32 %v1254, %v1276
    %1278 = vdwg.mxu0
    %1279 = vmatpush.msra.mxu0 %v1188
    %1280 = vmatpush.msra.mxu0 %v1187
    %1281 = vmatpush.msra.mxu0 %v1186
    %1282 = vmatpush.msra.mxu0 %v1185
    %1283 = vmatpush.msra.mxu0 %v1184
    %1284 = vmatpush.msra.mxu0 %v1183
    %1285 = vmatpush.msra.mxu0 %v1182
    %1286 = vmatpush.msra.mxu0 %v1181
    %1287 = vmatpush.msra.mxu0 %v1180
    %1288 = vmatpush.msra.mxu0 %v1179
    %1289 = vmatpush.msra.mxu0 %v1178
    %1290 = vmatpush.msra.mxu0 %v1177
    %1291 = vmatpush.msra.mxu0 %v1176
    %1292 = vmatpush.msra.mxu0 %v1175
    %1293 = vmatpush.msra.mxu0 %v1174
    %1294 = vmatpush.msra.mxu0 %v1173
    %1295 = vmatmul.f32.gmra.mxu0 %v1122
    %v1296 = vpop.f32.mrf.mxu0
    %v1297 = vadd.f32 %v1274, %v1296
    %1298 = vmatmul.f32.gmra.mxu0 %v1123
    %v1299 = vpop.f32.mrf.mxu0
    %v1300 = vadd.f32 %v1277, %v1299
    %1301 = vdwg.mxu0
    %1302 = vmatpush.msra.mxu0 %v1204
    %1303 = vmatpush.msra.mxu0 %v1203
    %1304 = vmatpush.msra.mxu0 %v1202
    %1305 = vmatpush.msra.mxu0 %v1201
    %1306 = vmatpush.msra.mxu0 %v1200
    %1307 = vmatpush.msra.mxu0 %v1199
    %1308 = vmatpush.msra.mxu0 %v1198
    %1309 = vmatpush.msra.mxu0 %v1197
    %1310 = vmatpush.msra.mxu0 %v1196
    %1311 = vmatpush.msra.mxu0 %v1195
    %1312 = vmatpush.msra.mxu0 %v1194
    %1313 = vmatpush.msra.mxu0 %v1193
    %1314 = vmatpush.msra.mxu0 %v1192
    %1315 = vmatpush.msra.mxu0 %v1191
    %1316 = vmatpush.msra.mxu0 %v1190
    %1317 = vmatpush.msra.mxu0 %v1189
    %1318 = vmatmul.f32.gmra.mxu0 %v1050
    %v1319 = vpop.f32.mrf.mxu0
    %v1320 = vadd.f32 %v1297, %v1319
    %1321 = vmatmul.f32.gmra.mxu0 %v1051
    %v1322 = vpop.f32.mrf.mxu0
    %v1323 = vadd.f32 %v1300, %v1322
    %1324 = vdwg.mxu0
    %v1325 = vmax.f32 %v1320, 0.0
    %v1326 = vmax.f32 %v1323, 0.0
    %v1327 = vrot.slane %v1325, 4
    %v1328 = vrot.slane %v1326, 4
    %v1329 = vsel %vm285, %v1327, %v1328
    %v1330 = vsel %vm285, %v1328, %v1327
    %v1331 = vsel %vm1084, 0.0, %v1330
    %v1332 = vsel %vm1085, 0.0, %v1329
    %v1333 = vrot.slane %v1325, 5
    %v1334 = vrot.slane %v1326, 5
    %v1335 = vsel %vm322, %v1333, %v1334
    %v1336 = vsel %vm322, %v1334, %v1333
    %v1337 = vsel %vm1096, 0.0, %v1336
    %v1338 = vsel %vm1097, 0.0, %v1335
    %v1339 = vrot.slane %v1325, 6
    %v1340 = vrot.slane %v1326, 6
    %v1341 = vsel %vm359, %v1339, %v1340
    %v1342 = vsel %vm359, %v1340, %v1339
    %v1343 = vsel %vm1108, 0.0, %v1342
    %v1344 = vsel %vm1109, 0.0, %v1341
    %v1345 = vrot.slane %v1325, 7
    %v1346 = vrot.slane %v1326, 7
    %v1347 = vsel %vm396, %v1345, %v1346
    %v1348 = vsel %vm396, %v1346, %v1345
    %v1349 = vsel %vm1120, 0.0, %v1348
    %v1350 = vsel %vm1121, 0.0, %v1347
    %s1351 = scalar_lea.vmem [#allocation6], 1920
    %v1352 = vld [vmem:[%s1351] sm:$0xff]
    %v1353 = vld [vmem:[%s1351 + $0x8] sm:$0xff]
    %v1354 = vld [vmem:[%s1351 + $0x10] sm:$0xff]
    %v1355 = vld [vmem:[%s1351 + $0x18] sm:$0xff]
    %v1356 = vld [vmem:[%s1351 + $0x20] sm:$0xff]
    %v1357 = vld [vmem:[%s1351 + $0x28] sm:$0xff]
    %v1358 = vld [vmem:[%s1351 + $0x30] sm:$0xff]
    %v1359 = vld [vmem:[%s1351 + $0x38] sm:$0xff]
    %v1360 = vld [vmem:[%s1351 + $0x40] sm:$0xff]
    %v1361 = vld [vmem:[%s1351 + $0x48] sm:$0xff]
    %v1362 = vld [vmem:[%s1351 + $0x50] sm:$0xff]
    %v1363 = vld [vmem:[%s1351 + $0x58] sm:$0xff]
    %v1364 = vld [vmem:[%s1351 + $0x60] sm:$0xff]
    %v1365 = vld [vmem:[%s1351 + $0x68] sm:$0xff]
    %v1366 = vld [vmem:[%s1351 + $0x70] sm:$0xff]
    %v1367 = vld [vmem:[%s1351 + $0x78] sm:$0xff]
    %v1368 = vld [vmem:[%s1351 + $0x80] sm:$0xff]
    %v1369 = vld [vmem:[%s1351 + $0x88] sm:$0xff]
    %v1370 = vld [vmem:[%s1351 + $0x90] sm:$0xff]
    %v1371 = vld [vmem:[%s1351 + $0x98] sm:$0xff]
    %v1372 = vld [vmem:[%s1351 + $0xa0] sm:$0xff]
    %v1373 = vld [vmem:[%s1351 + $0xa8] sm:$0xff]
    %v1374 = vld [vmem:[%s1351 + $0xb0] sm:$0xff]
    %v1375 = vld [vmem:[%s1351 + $0xb8] sm:$0xff]
    %v1376 = vld [vmem:[%s1351 + $0xc0] sm:$0xff]
    %v1377 = vld [vmem:[%s1351 + $0xc8] sm:$0xff]
    %v1378 = vld [vmem:[%s1351 + $0xd0] sm:$0xff]
    %v1379 = vld [vmem:[%s1351 + $0xd8] sm:$0xff]
    %v1380 = vld [vmem:[%s1351 + $0xe0] sm:$0xff]
    %v1381 = vld [vmem:[%s1351 + $0xe8] sm:$0xff]
    %v1382 = vld [vmem:[%s1351 + $0xf0] sm:$0xff]
    %v1383 = vld [vmem:[%s1351 + $0xf8] sm:$0xff]
    %v1384 = vld [vmem:[%s1351 + $0x100] sm:$0xff]
    %v1385 = vld [vmem:[%s1351 + $0x108] sm:$0xff]
    %v1386 = vld [vmem:[%s1351 + $0x110] sm:$0xff]
    %v1387 = vld [vmem:[%s1351 + $0x118] sm:$0xff]
    %v1388 = vld [vmem:[%s1351 + $0x120] sm:$0xff]
    %v1389 = vld [vmem:[%s1351 + $0x128] sm:$0xff]
    %v1390 = vld [vmem:[%s1351 + $0x130] sm:$0xff]
    %v1391 = vld [vmem:[%s1351 + $0x138] sm:$0xff]
    %v1392 = vld [vmem:[%s1351 + $0x140] sm:$0xff]
    %v1393 = vld [vmem:[%s1351 + $0x148] sm:$0xff]
    %v1394 = vld [vmem:[%s1351 + $0x150] sm:$0xff]
    %v1395 = vld [vmem:[%s1351 + $0x158] sm:$0xff]
    %v1396 = vld [vmem:[%s1351 + $0x160] sm:$0xff]
    %v1397 = vld [vmem:[%s1351 + $0x168] sm:$0xff]
    %v1398 = vld [vmem:[%s1351 + $0x170] sm:$0xff]
    %v1399 = vld [vmem:[%s1351 + $0x178] sm:$0xff]
    %v1400 = vld [vmem:[%s1351 + $0x180] sm:$0xff]
    %v1401 = vld [vmem:[%s1351 + $0x188] sm:$0xff]
    %v1402 = vld [vmem:[%s1351 + $0x190] sm:$0xff]
    %v1403 = vld [vmem:[%s1351 + $0x198] sm:$0xff]
    %v1404 = vld [vmem:[%s1351 + $0x1a0] sm:$0xff]
    %v1405 = vld [vmem:[%s1351 + $0x1a8] sm:$0xff]
    %v1406 = vld [vmem:[%s1351 + $0x1b0] sm:$0xff]
    %v1407 = vld [vmem:[%s1351 + $0x1b8] sm:$0xff]
    %v1408 = vld [vmem:[%s1351 + $0x1c0] sm:$0xff]
    %v1409 = vld [vmem:[%s1351 + $0x1c8] sm:$0xff]
    %v1410 = vld [vmem:[%s1351 + $0x1d0] sm:$0xff]
    %v1411 = vld [vmem:[%s1351 + $0x1d8] sm:$0xff]
    %v1412 = vld [vmem:[%s1351 + $0x1e0] sm:$0xff]
    %v1413 = vld [vmem:[%s1351 + $0x1e8] sm:$0xff]
    %v1414 = vld [vmem:[%s1351 + $0x1f0] sm:$0xff]
    %v1415 = vld [vmem:[%s1351 + $0x1f8] sm:$0xff]
    %v1416 = vld [vmem:[%s1351 + $0x200] sm:$0xff]
    %v1417 = vld [vmem:[%s1351 + $0x208] sm:$0xff]
    %v1418 = vld [vmem:[%s1351 + $0x210] sm:$0xff]
    %v1419 = vld [vmem:[%s1351 + $0x218] sm:$0xff]
    %v1420 = vld [vmem:[%s1351 + $0x220] sm:$0xff]
    %v1421 = vld [vmem:[%s1351 + $0x228] sm:$0xff]
    %v1422 = vld [vmem:[%s1351 + $0x230] sm:$0xff]
    %v1423 = vld [vmem:[%s1351 + $0x238] sm:$0xff]
    %v1424 = vld [vmem:[%s1351 + $0x240] sm:$0xff]
    %v1425 = vld [vmem:[%s1351 + $0x248] sm:$0xff]
    %v1426 = vld [vmem:[%s1351 + $0x250] sm:$0xff]
    %v1427 = vld [vmem:[%s1351 + $0x258] sm:$0xff]
    %v1428 = vld [vmem:[%s1351 + $0x260] sm:$0xff]
    %v1429 = vld [vmem:[%s1351 + $0x268] sm:$0xff]
    %v1430 = vld [vmem:[%s1351 + $0x270] sm:$0xff]
    %v1431 = vld [vmem:[%s1351 + $0x278] sm:$0xff]
    %s1432 = scalar_lea.vmem [#allocation8], 3
    %v1433 = vld [vmem:[%s1432] sm:$0x1]
    %v1435 = vperm.slane %v1433, 0
    %1437 = vmatpush.msra.mxu0 %v1367
    %1438 = vmatpush.msra.mxu0 %v1366
    %1439 = vmatpush.msra.mxu0 %v1365
    %1440 = vmatpush.msra.mxu0 %v1364
    %1441 = vmatpush.msra.mxu0 %v1363
    %1442 = vmatpush.msra.mxu0 %v1362
    %1443 = vmatpush.msra.mxu0 %v1361
    %1444 = vmatpush.msra.mxu0 %v1360
    %1445 = vmatpush.msra.mxu0 %v1359
    %1446 = vmatpush.msra.mxu0 %v1358
    %1447 = vmatpush.msra.mxu0 %v1357
    %1448 = vmatpush.msra.mxu0 %v1356
    %1449 = vmatpush.msra.mxu0 %v1355
    %1450 = vmatpush.msra.mxu0 %v1354
    %1451 = vmatpush.msra.mxu0 %v1353
    %1452 = vmatpush.msra.mxu0 %v1352
    %1453 = vmatmul.f32.gmra.mxu0 %v1331
    %v1454 = vpop.f32.mrf.mxu0
    %v1455 = vadd.f32 %v1435, %v1454
    %1456 = vmatmul.f32.gmra.mxu0 %v1332
    %v1457 = vpop.f32.mrf.mxu0
    %v1458 = vadd.f32 %v1435, %v1457
    %1459 = vdwg.mxu0
    %1460 = vmatpush.msra.mxu0 %v1383
    %1461 = vmatpush.msra.mxu0 %v1382
    %1462 = vmatpush.msra.mxu0 %v1381
    %1463 = vmatpush.msra.mxu0 %v1380
    %1464 = vmatpush.msra.mxu0 %v1379
    %1465 = vmatpush.msra.mxu0 %v1378
    %1466 = vmatpush.msra.mxu0 %v1377
    %1467 = vmatpush.msra.mxu0 %v1376
    %1468 = vmatpush.msra.mxu0 %v1375
    %1469 = vmatpush.msra.mxu0 %v1374
    %1470 = vmatpush.msra.mxu0 %v1373
    %1471 = vmatpush.msra.mxu0 %v1372
    %1472 = vmatpush.msra.mxu0 %v1371
    %1473 = vmatpush.msra.mxu0 %v1370
    %1474 = vmatpush.msra.mxu0 %v1369
    %1475 = vmatpush.msra.mxu0 %v1368
    %1476 = vmatmul.f32.gmra.mxu0 %v1337
    %v1477 = vpop.f32.mrf.mxu0
    %v1478 = vadd.f32 %v1455, %v1477
    %1479 = vmatmul.f32.gmra.mxu0 %v1338
    %v1480 = vpop.f32.mrf.mxu0
    %v1481 = vadd.f32 %v1458, %v1480
    %1482 = vdwg.mxu0
    %1483 = vmatpush.msra.mxu0 %v1399
    %1484 = vmatpush.msra.mxu0 %v1398
    %1485 = vmatpush.msra.mxu0 %v1397
    %1486 = vmatpush.msra.mxu0 %v1396
    %1487 = vmatpush.msra.mxu0 %v1395
    %1488 = vmatpush.msra.mxu0 %v1394
    %1489 = vmatpush.msra.mxu0 %v1393
    %1490 = vmatpush.msra.mxu0 %v1392
    %1491 = vmatpush.msra.mxu0 %v1391
    %1492 = vmatpush.msra.mxu0 %v1390
    %1493 = vmatpush.msra.mxu0 %v1389
    %1494 = vmatpush.msra.mxu0 %v1388
    %1495 = vmatpush.msra.mxu0 %v1387
    %1496 = vmatpush.msra.mxu0 %v1386
    %1497 = vmatpush.msra.mxu0 %v1385
    %1498 = vmatpush.msra.mxu0 %v1384
    %1499 = vmatmul.f32.gmra.mxu0 %v1343
    %v1500 = vpop.f32.mrf.mxu0
    %v1501 = vadd.f32 %v1478, %v1500
    %1502 = vmatmul.f32.gmra.mxu0 %v1344
    %v1503 = vpop.f32.mrf.mxu0
    %v1504 = vadd.f32 %v1481, %v1503
    %1505 = vdwg.mxu0
    %1506 = vmatpush.msra.mxu0 %v1415
    %1507 = vmatpush.msra.mxu0 %v1414
    %1508 = vmatpush.msra.mxu0 %v1413
    %1509 = vmatpush.msra.mxu0 %v1412
    %1510 = vmatpush.msra.mxu0 %v1411
    %1511 = vmatpush.msra.mxu0 %v1410
    %1512 = vmatpush.msra.mxu0 %v1409
    %1513 = vmatpush.msra.mxu0 %v1408
    %1514 = vmatpush.msra.mxu0 %v1407
    %1515 = vmatpush.msra.mxu0 %v1406
    %1516 = vmatpush.msra.mxu0 %v1405
    %1517 = vmatpush.msra.mxu0 %v1404
    %1518 = vmatpush.msra.mxu0 %v1403
    %1519 = vmatpush.msra.mxu0 %v1402
    %1520 = vmatpush.msra.mxu0 %v1401
    %1521 = vmatpush.msra.mxu0 %v1400
    %1522 = vmatmul.f32.gmra.mxu0 %v1349
    %v1523 = vpop.f32.mrf.mxu0
    %v1524 = vadd.f32 %v1501, %v1523
    %1525 = vmatmul.f32.gmra.mxu0 %v1350
    %v1526 = vpop.f32.mrf.mxu0
    %v1527 = vadd.f32 %v1504, %v1526
    %1528 = vdwg.mxu0
    %1529 = vmatpush.msra.mxu0 %v1431
    %1530 = vmatpush.msra.mxu0 %v1430
    %1531 = vmatpush.msra.mxu0 %v1429
    %1532 = vmatpush.msra.mxu0 %v1428
    %1533 = vmatpush.msra.mxu0 %v1427
    %1534 = vmatpush.msra.mxu0 %v1426
    %1535 = vmatpush.msra.mxu0 %v1425
    %1536 = vmatpush.msra.mxu0 %v1424
    %1537 = vmatpush.msra.mxu0 %v1423
    %1538 = vmatpush.msra.mxu0 %v1422
    %1539 = vmatpush.msra.mxu0 %v1421
    %1540 = vmatpush.msra.mxu0 %v1420
    %1541 = vmatpush.msra.mxu0 %v1419
    %1542 = vmatpush.msra.mxu0 %v1418
    %1543 = vmatpush.msra.mxu0 %v1417
    %1544 = vmatpush.msra.mxu0 %v1416
    %1545 = vmatmul.f32.gmra.mxu0 %v1325
    %v1546 = vpop.f32.mrf.mxu0
    %v1547 = vadd.f32 %v1524, %v1546
    %1548 = vmatmul.f32.gmra.mxu0 %v1326
    %v1549 = vpop.f32.mrf.mxu0
    %v1550 = vadd.f32 %v1527, %v1549
    %1551 = vdwg.mxu0
    %v1552 = vmax.f32 %v1547, 0.0
    %v1553 = vmax.f32 %v1550, 0.0
    %1554 = vst [vmem:[#allocation2] sm:$0xff] %v1552
    %1555 = vst [vmem:[#allocation2 + $0x8] sm:$0xff] %v1553
    %v1556 = vld [vmem:[#allocation2] ss:$2 sm:$0xff]
    %v1557 = vld [vmem:[%s1040] ss:$2 sm:$0xff]
    %v1558 = vmax.f32 %v1556, %v1557
    %v1560 = vrot.slane %v1558, 4
    %1562 = vst [vmem:[#allocation9] sm:$0xf] %v1558
    %1563 = vst [vmem:[#allocation9 + $0x4] sm:$0xf] %v1560
    // Predicated region
    $region26: #{tpu_custom_call.1} parent=1 // pred_check
      _
    $region27: #{tpu_custom_call.1} parent=1 // pred_check_branch
      %1565 = sbr.rel (0) target = $region29
    $region28: #{tpu_custom_call.1} parent=1 // pred_region
      %1567 = vsyncadd [#allocation5], 0
      %s1568 = sshll.u32 [#allocation9], 4
      %s1569 = int_to_ptr.vmem [resolvable:$true] %s1568
      %s1570 = sshll.u32 %s3, 4
      %s1571 = int_to_ptr.hbm [resolvable:$true] %s1570
      %1576 = dma.vmem_to_hbm [thread:$0]  %s1569, 128, %s1571, [#allocation5], 64, 64, 4
    $region29: #{tpu_custom_call.1} parent=1 // pred_fallthru
      _
    // Predicated region
    $region30: #{tpu_custom_call.1} parent=1 // pred_check
      _
    $region31: #{tpu_custom_call.1} parent=1 // pred_check_branch
      %1578 = sbr.rel (0) target = $region33
    $region32: #{tpu_custom_call.1} parent=1 // pred_region
      %1580 = dma.done [#allocation5], 128
    $region33: #{tpu_custom_call.1} parent=1 // pred_fallthru
      _
    %1581 = vsyncpa [#allocation4], 1
    %1582 = vsyncpa [#allocation7], 1
    %1583 = vsyncpa [#allocation5], 1

</llo_original>
